<compile_context>
chip_gen: v5e
topology: v5e:2x2
jax: 0.10.0
libtpu: 0.0.40
codegen_flags: <defaults>
</compile_context>

<pallas_src>
import functools

import jax
import jax.numpy as jnp
from jax.experimental import pallas as pl
from jax.experimental.pallas import tpu as pltpu

_SQRT_HALF = 0.7071067811865476


def _gelu(x, approximate):
    if approximate:
        # tanh approximation -> exp/tanh routed to the (otherwise idle) EUP.
        return jax.nn.gelu(x, approximate=True)
    # Exact erf formulation == PyTorch nn.GELU() default.
    return 0.5 * x * (1.0 + jax.lax.erf(x * _SQRT_HALF))


def _round_up(x, m):
    return (x + m - 1) // m * m


def _vmem_capacity_bytes():
    try:
        return int(pltpu.get_tpu_info().vmem_capacity_bytes)
    except Exception:
        return 64 * 1024 * 1024  # conservative fallback (v7x-sized)


# --------------------------------------------------------------------------
# Kernels.
# --------------------------------------------------------------------------
def _mlp_kernel_resident(x_ref, w1_ref, b1_ref, w2_ref, b2_ref, o_ref, *,
                         approximate_gelu):
    """Weights fully resident: grid = (M tiles,)."""
    x = x_ref[...].astype(w1_ref.dtype)                    # in-kernel cast (VPU)
    h = jnp.dot(x, w1_ref[...], preferred_element_type=jnp.float32)
    h = _gelu(h + b1_ref[...], approximate_gelu)           # bias + GELU in f32
    # Dropout with p=0.0 is the identity -> no-op.
    y = jnp.dot(h.astype(w2_ref.dtype), w2_ref[...],
                preferred_element_type=jnp.float32)
    o_ref[...] = (y + b2_ref[...]).astype(o_ref.dtype)


def _mlp_kernel_tiled(x_ref, w1_ref, b1_ref, w2_ref, b2_ref, o_ref, acc_ref, *,
                      approximate_gelu):
    """Hidden dim tiled: grid = (M tiles, H tiles); H is the reduction axis."""
    j = pl.program_id(1)

    @pl.when(j == 0)
    def _init():
        acc_ref[...] = jnp.zeros_like(acc_ref)

    x = x_ref[...].astype(w1_ref.dtype)
    h = jnp.dot(x, w1_ref[...], preferred_element_type=jnp.float32)
    h = _gelu(h + b1_ref[...], approximate_gelu)
    acc_ref[...] += jnp.dot(h.astype(w2_ref.dtype), w2_ref[...],
                            preferred_element_type=jnp.float32)

    @pl.when(j == pl.num_programs(1) - 1)
    def _finalize():
        o_ref[...] = (acc_ref[...] + b2_ref[...]).astype(o_ref.dtype)


# --------------------------------------------------------------------------
# One-time parameter preparation (hoisted out of the per-forward path).
# --------------------------------------------------------------------------
def _pick_th(c, h_p, o_p, itemsize, budget_bytes):
    """Prefer fully-resident weights; otherwise pick the largest H tile
    (multiple of 128, <= 512, dividing H_pad) whose double-buffered weight
    blocks fit the budget."""
    if (c * h_p + h_p * o_p) * itemsize <= budget_bytes:
        return h_p                                   # fully resident
    th = min(512, h_p)
    while th >= 128:
        if h_p % th == 0 and (c * th + th * o_p) * itemsize * 2 <= budget_bytes:
            return th
        th -= 128
    return 128


def prepare_mlp_params(w1, b1, w2, b2, *, compute_dtype=jnp.bfloat16, th=None,
                       weight_block_budget_bytes=24 * 1024 * 1024):
    """w1: (H, C), b1: (H,), w2: (O, H), b2: (O,)  (PyTorch nn.Linear layout).

    Returns pre-transposed weights (cast to compute_dtype, H/O lane-padded to
    128 multiples; C left unpadded) plus the chosen hidden tile size.  Call
    once; reuse for every forward.
    """
    H, C = w1.shape
    O = w2.shape[0]
    assert w2.shape[1] == H and b1.shape == (H,) and b2.shape == (O,)

    cdt = jnp.dtype(compute_dtype)
    o_p = _round_up(O, 128)
    h_p = _round_up(H, 128)

    if th is None:
        th = _pick_th(C, h_p, o_p, cdt.itemsize, weight_block_budget_bytes)
    th = min(_round_up(th, 128), h_p)
    h_p = _round_up(h_p, th)

    # W1: (C, H_pad)  -- C unpadded (full-extent block dim), H zero-padded.
    # W2: (H_pad, O_pad) -- zero-padded rows/cols contribute exactly 0.
    w1_t = jnp.zeros((C, h_p), cdt).at[:, :H].set(w1.T.astype(cdt))
    w2_t = jnp.zeros((h_p, o_p), cdt).at[:H, :O].set(w2.T.astype(cdt))
    b1_p = jnp.zeros((1, h_p), jnp.float32).at[0, :H].set(b1.astype(jnp.float32))
    b2_p = jnp.zeros((1, o_p), jnp.float32).at[0, :O].set(b2.astype(jnp.float32))

    return dict(w1=w1_t, b1=b1_p, w2=w2_t, b2=b2_p,
                C=C, H=H, O=O, O_pad=o_p, H_pad=h_p, th=th, compute_dtype=cdt)


# --------------------------------------------------------------------------
# Forward wrapper.
# --------------------------------------------------------------------------
def mlp_forward(x, params, *, tm=None, approximate_gelu=None, interpret=False):
    """x: (..., C) channels-last tokens; returns (..., O) in x.dtype."""
    orig_shape = x.shape
    C, H, O = params["C"], params["H"], params["O"]
    assert orig_shape[-1] == C, f"last dim {orig_shape[-1]} != in_features {C}"
    o_p, h_p, th = params["O_pad"], params["H_pad"], params["th"]
    cdt = params["compute_dtype"]
    wsz = cdt.itemsize

    M = 1
    for d in orig_shape[:-1]:
        M *= d

    num_h = h_p // th
    const_w = (num_h == 1)            # weight blocks never change across grid

    vmem_cap = _vmem_capacity_bytes()

    # GELU flavor: tanh-approx by default for narrow stages (VPU-bound),
    # exact-erf for wide stages (matches PyTorch bit-for-bit-ish).
    if approximate_gelu is None:
        approximate_gelu = (C + o_p) <= 1024

    # Token-tile size: big for MXU fill / per-step amortization, but shrink so
    # num_m >= 2 (v7x megacore sharding of the "parallel" M axis).
    sub = 16                                        # safe sublane quantum
    if tm is None:
        tm = 512 if (const_w and vmem_cap > 100 * 1024 * 1024) else 256
    tm = _round_up(max(sub, min(tm, _round_up((M + 1) // 2, sub))), sub)
    m_p = _round_up(M, tm)
    num_m = m_p // tm

    x2 = x.reshape(M, C)
    if m_p != M:                                    # pad M tail only when needed
        x2 = jnp.pad(x2, ((0, m_p - M), (0, 0)))

    def _spec(shape, index_map, single_buffer):
        if single_buffer:   # constant across the grid -> no double-buffering
            return pl.BlockSpec(shape, index_map, pipeline_mode=pl.Buffered(1))
        return pl.BlockSpec(shape, index_map)

    # Resident-set estimate -> scoped VMEM limit with 25% chip headroom.
    w_bufs = 1 if const_w else 2
    resident = (2 * tm * C * x.dtype.itemsize            # x tiles (2 bufs)
                + w_bufs * (C * th + th * o_p) * wsz     # weight blocks
                + 4 * (w_bufs * th + o_p)                # f32 biases
                + 2 * tm * o_p * x.dtype.itemsize        # output tiles (2 bufs)
                + (0 if const_w else tm * o_p * 4)       # f32 accumulator
                + tm * min(th, 512) * 4)                 # f32 GELU intermediate
    vmem_limit = int(min(max(int(1.5 * resident), 32 * 1024 * 1024),
                         int(0.75 * vmem_cap)))

    cost = pl.CostEstimate(
        flops=2 * M * (C * H + H * O),
        transcendentals=(M * H if approximate_gelu else 0),
        bytes_accessed=(M * C * x.dtype.itemsize
                        + (C * h_p + h_p * o_p) * wsz * (1 if const_w else num_m)
                        + 4 * (h_p + o_p)
                        + m_p * o_p * x.dtype.itemsize))

    if const_w:
        kernel = functools.partial(_mlp_kernel_resident,
                                   approximate_gelu=approximate_gelu)
        grid_spec = pltpu.PrefetchScalarGridSpec(
            num_scalar_prefetch=0,
            grid=(num_m,),
            in_specs=[
                pl.BlockSpec((tm, C), lambda i: (i, 0)),          # x tile
                _spec((C, h_p), lambda i: (0, 0), True),          # W1 (resident)
                _spec((1, h_p), lambda i: (0, 0), True),          # b1
                _spec((h_p, o_p), lambda i: (0, 0), True),        # W2 (resident)
                _spec((1, o_p), lambda i: (0, 0), True),          # b2
            ],
            out_specs=pl.BlockSpec((tm, o_p), lambda i: (i, 0)),
            scratch_shapes=[],
        )
        dim_sem = ("parallel",)
    else:
        kernel = functools.partial(_mlp_kernel_tiled,
                                   approximate_gelu=approximate_gelu)
        grid_spec = pltpu.PrefetchScalarGridSpec(
            num_scalar_prefetch=0,
            grid=(num_m, num_h),                                  # H last
            in_specs=[
                pl.BlockSpec((tm, C), lambda i, j: (i, 0)),       # x tile
                pl.BlockSpec((C, th), lambda i, j: (0, j)),       # W1 block
                pl.BlockSpec((1, th), lambda i, j: (0, j)),       # b1 block
                pl.BlockSpec((th, o_p), lambda i, j: (j, 0)),     # W2 block
                _spec((1, o_p), lambda i, j: (0, 0), True),       # b2 (const)
            ],
            out_specs=pl.BlockSpec((tm, o_p), lambda i, j: (i, 0)),
            scratch_shapes=[pltpu.VMEM((tm, o_p), jnp.float32)],  # f32 acc
        )
        dim_sem = ("parallel", "arbitrary")

    out = pl.pallas_call(
        kernel,
        out_shape=jax.ShapeDtypeStruct((m_p, o_p), x.dtype),
        grid_spec=grid_spec,
        compiler_params=pltpu.CompilerParams(
            dimension_semantics=dim_sem,
            vmem_limit_bytes=vmem_limit),
        cost_estimate=cost,
        interpret=interpret,
    )(x2, params["w1"], params["b1"], params["w2"], params["b2"])

    return out[:M, :O].reshape(orig_shape[:-1] + (O,))


# --------------------------------------------------------------------------
# Pure-JAX reference (exact-erf GELU, f32), matches the PyTorch module.
# --------------------------------------------------------------------------
def reference_mlp(x, w1, b1, w2, b2):
    xf = x.astype(jnp.float32)
    h = jnp.einsum("...c,hc->...h", xf, w1.astype(jnp.float32)) + b1
    h = _gelu(h, approximate=False)
    return jnp.einsum("...h,oh->...o", h, w2.astype(jnp.float32)) + b2


if __name__ == "__main__":
    key = jax.random.PRNGKey(0)
    kx, kw1, kb1, kw2, kb2 = jax.random.split(key, 5)

    # Case 1: lane-aligned shapes, f32 compute, hidden dim explicitly tiled
    # (exercises the H-reduction grid axis + f32 accumulator path).
    B, N, C, H, O = 2, 256, 128, 512, 128
    x = jax.random.normal(kx, (B, N, C), dtype=jnp.float32)
    w1 = jax.random.normal(kw1, (H, C), dtype=jnp.float32) * 0.05
    b1 = jax.random.normal(kb1, (H,), dtype=jnp.float32) * 0.05
    w2 = jax.random.normal(kw2, (O, H), dtype=jnp.float32) * 0.05
    b2 = jax.random.normal(kb2, (O,), dtype=jnp.float32) * 0.05
    y_ref = reference_mlp(x, w1, b1, w2, b2)

    p_f32 = prepare_mlp_params(w1, b1, w2, b2, compute_dtype=jnp.float32, th=256)
    y = mlp_forward(x, p_f32)
    jax.block_until_ready(y)
    assert y.shape == (B, N, O)
    assert jnp.allclose(y, y_ref, atol=2e-2, rtol=2e-2), "f32 tiled-H mismatch"

    # Case 2: default bf16 MXU inputs with f32 accumulation, fully-resident
    # (single-buffered) weights, single-axis grid.
    p_bf16 = prepare_mlp_params(w1, b1, w2, b2)          # bf16 default
    y16 = mlp_forward(x, p_bf16)
    jax.block_until_ready(y16)
    assert y16.shape == (B, N, O)
    assert jnp.allclose(y16.astype(jnp.float32), y_ref, atol=7e-2, rtol=7e-2), \
        "bf16 mismatch"

    # Case 3: Swin-like non-aligned shapes (7x7 windows -> 49 tokens, C=96):
    # exercises the M-tail padding, non-128 channel dim, num_m>=2 shrink.
    k2 = jax.random.split(key, 5)
    Bw, Nw, Cw, Hw, Ow = 4, 49, 96, 384, 96
    xw = jax.random.normal(k2[0], (Bw, Nw, Cw), dtype=jnp.float32)
    w1w = jax.random.normal(k2[1], (Hw, Cw), dtype=jnp.float32) * 0.05
    b1w = jax.random.normal(k2[2], (Hw,), dtype=jnp.float32) * 0.05
    w2w = jax.random.normal(k2[3], (Ow, Hw), dtype=jnp.float32) * 0.05
    b2w = jax.random.normal(k2[4], (Ow,), dtype=jnp.float32) * 0.05
    pw = prepare_mlp_params(w1w, b1w, w2w, b2w, compute_dtype=jnp.float32)
    yw = mlp_forward(xw, pw)
    jax.block_until_ready(yw)
    yw_ref = reference_mlp(xw, w1w, b1w, w2w, b2w)
    assert yw.shape == (Bw, Nw, Ow)
    assert jnp.allclose(yw, yw_ref, atol=2e-2, rtol=2e-2), "padded-shape mismatch"

    print("KERNEL_OK")
</pallas_src>

<mosaic_0001>
module attributes {stable_mosaic.version = 11 : i64} {
  func.func @_mlp_kernel_tiled(%arg0: i32, %arg1: i32, %arg2: memref<256x128xf32, #tpu.memory_space<vmem>>, %arg3: memref<128x256xf32, #tpu.memory_space<vmem>>, %arg4: memref<1x256xf32, #tpu.memory_space<vmem>>, %arg5: memref<256x128xf32, #tpu.memory_space<vmem>>, %arg6: memref<1x128xf32, #tpu.memory_space<vmem>>, %arg7: memref<256x128xf32, #tpu.memory_space<vmem>>, %arg8: memref<256x128xf32, #tpu.memory_space<vmem>>) attributes {dimension_semantics = [#tpu.dimension_semantics<parallel>, #tpu.dimension_semantics<arbitrary>], iteration_bounds = array<i64: 2, 2>, scalar_prefetch = 0 : i64, scratch_operands = 1 : i64, tpu.core_type = #tpu.core_type<tc>, window_params = [{transform_indices = @transform_0, window_bounds = array<i64: 256, 128>}, {transform_indices = @transform_1, window_bounds = array<i64: 128, 256>}, {transform_indices = @transform_2, window_bounds = array<i64: 1, 256>}, {transform_indices = @transform_3, window_bounds = array<i64: 256, 128>}, {pipeline_mode = #tpu.pipeline_mode<synchronous>, transform_indices = @transform_4, window_bounds = array<i64: 1, 128>}, {transform_indices = @transform_5, window_bounds = array<i64: 256, 128>}]} {
    %c0_i32 = arith.constant 0 : i32
    %0 = arith.cmpi eq, %arg1, %c0_i32 : i32
    %1 = arith.extui %0 : i1 to i32
    %c0_i32_0 = arith.constant 0 : i32
    %2 = arith.cmpi ne, %1, %c0_i32_0 : i32
    scf.if %2 {
      %cst_18 = arith.constant 0.000000e+00 : f32
      %30 = vector.broadcast %cst_18 : f32 to vector<256x128xf32>
      %c0_19 = arith.constant 0 : index
      %c0_20 = arith.constant 0 : index
      %31 = vector.load %arg8[%c0_19, %c0_20] : memref<256x128xf32, #tpu.memory_space<vmem>>, vector<256x128xf32>
      tpu.vector_store %arg8[%c0_19, %c0_20], %30 {strides = array<i32>} : memref<256x128xf32, #tpu.memory_space<vmem>>, vector<256x128xf32>,
    } else {
    }
    %c0 = arith.constant 0 : index
    %c0_1 = arith.constant 0 : index
    %3 = vector.load %arg2[%c0, %c0_1] : memref<256x128xf32, #tpu.memory_space<vmem>>, vector<256x128xf32>
    %c0_2 = arith.constant 0 : index
    %c0_3 = arith.constant 0 : index
    %4 = vector.load %arg3[%c0_2, %c0_3] : memref<128x256xf32, #tpu.memory_space<vmem>>, vector<128x256xf32>
    %cst = arith.constant dense<0.000000e+00> : vector<256x256xf32>
    %5 = tpu.matmul %3, %4, %cst {dimension_numbers = #tpu.dot_dimension_numbers<[1], [0], [0], [1], [0, 0, 1, 1], [], []>} : vector<256x128xf32>, vector<128x256xf32>, vector<256x256xf32> -> vector<256x256xf32>
    %c0_4 = arith.constant 0 : index
    %c0_5 = arith.constant 0 : index
    %6 = vector.load %arg4[%c0_4, %c0_5] : memref<1x256xf32, #tpu.memory_space<vmem>>, vector<1x256xf32>
    %7 = vector.broadcast %6 : vector<1x256xf32> to vector<256x256xf32>
    %8 = arith.addf %5, %7 : vector<256x256xf32>
    %9 = arith.mulf %8, %8 : vector<256x256xf32>
    %10 = arith.mulf %8, %9 : vector<256x256xf32>
    %cst_6 = arith.constant 4.471500e-02 : f32
    %11 = vector.broadcast %cst_6 : f32 to vector<256x256xf32>
    %12 = arith.mulf %11, %10 : vector<256x256xf32>
    %13 = arith.addf %8, %12 : vector<256x256xf32>
    %cst_7 = arith.constant 0.797884583 : f32
    %14 = vector.broadcast %cst_7 : f32 to vector<256x256xf32>
    %15 = arith.mulf %14, %13 : vector<256x256xf32>
    %16 = math.tanh %15 : vector<256x256xf32>
    %cst_8 = arith.constant 1.000000e+00 : f32
    %17 = vector.broadcast %cst_8 : f32 to vector<256x256xf32>
    %18 = arith.addf %17, %16 : vector<256x256xf32>
    %cst_9 = arith.constant 5.000000e-01 : f32
    %19 = vector.broadcast %cst_9 : f32 to vector<256x256xf32>
    %20 = arith.mulf %19, %18 : vector<256x256xf32>
    %21 = arith.mulf %8, %20 : vector<256x256xf32>
    %c0_10 = arith.constant 0 : index
    %c0_11 = arith.constant 0 : index
    %22 = vector.load %arg8[%c0_10, %c0_11] : memref<256x128xf32, #tpu.memory_space<vmem>>, vector<256x128xf32>
    %c0_12 = arith.constant 0 : index
    %c0_13 = arith.constant 0 : index
    %23 = vector.load %arg5[%c0_12, %c0_13] : memref<256x128xf32, #tpu.memory_space<vmem>>, vector<256x128xf32>
    %cst_14 = arith.constant dense<0.000000e+00> : vector<256x128xf32>
    %24 = tpu.matmul %21, %23, %cst_14 {dimension_numbers = #tpu.dot_dimension_numbers<[1], [0], [0], [1], [0, 0, 1, 1], [], []>} : vector<256x256xf32>, vector<256x128xf32>, vector<256x128xf32> -> vector<256x128xf32>
    %25 = arith.addf %22, %24 : vector<256x128xf32>
    %c0_15 = arith.constant 0 : index
    %c0_16 = arith.constant 0 : index
    %26 = vector.load %arg8[%c0_15, %c0_16] : memref<256x128xf32, #tpu.memory_space<vmem>>, vector<256x128xf32>
    tpu.vector_store %arg8[%c0_15, %c0_16], %25 {strides = array<i32>} : memref<256x128xf32, #tpu.memory_space<vmem>>, vector<256x128xf32>,
    %c1_i32 = arith.constant 1 : i32
    %27 = arith.cmpi eq, %arg1, %c1_i32 : i32
    %28 = arith.extui %27 : i1 to i32
    %c0_i32_17 = arith.constant 0 : i32
    %29 = arith.cmpi ne, %28, %c0_i32_17 : i32
    scf.if %29 {
      %c0_18 = arith.constant 0 : index
      %c0_19 = arith.constant 0 : index
      %30 = vector.load %arg8[%c0_18, %c0_19] : memref<256x128xf32, #tpu.memory_space<vmem>>, vector<256x128xf32>
      %c0_20 = arith.constant 0 : index
      %c0_21 = arith.constant 0 : index
      %31 = vector.load %arg6[%c0_20, %c0_21] : memref<1x128xf32, #tpu.memory_space<vmem>>, vector<1x128xf32>
      %32 = vector.broadcast %31 : vector<1x128xf32> to vector<256x128xf32>
      %33 = arith.addf %30, %32 : vector<256x128xf32>
      %c0_22 = arith.constant 0 : index
      %c0_23 = arith.constant 0 : index
      %34 = vector.load %arg7[%c0_22, %c0_23] : memref<256x128xf32, #tpu.memory_space<vmem>>, vector<256x128xf32>
      tpu.vector_store %arg7[%c0_22, %c0_23], %33 {strides = array<i32>} : memref<256x128xf32, #tpu.memory_space<vmem>>, vector<256x128xf32>,
    } else {
    }
    return
  }
  func.func @transform_0(%arg0: i32, %arg1: i32) -> (i32, i32) {
    %c0_i32 = arith.constant 0 : i32
    %c0_i32_0 = arith.constant 0 : i32
    return %arg0, %c0_i32 : i32, i32
  }
  func.func @transform_1(%arg0: i32, %arg1: i32) -> (i32, i32) {
    %c0_i32 = arith.constant 0 : i32
    %c0_i32_0 = arith.constant 0 : i32
    return %c0_i32, %arg1 : i32, i32
  }
  func.func @transform_2(%arg0: i32, %arg1: i32) -> (i32, i32) {
    %c0_i32 = arith.constant 0 : i32
    %c0_i32_0 = arith.constant 0 : i32
    return %c0_i32, %arg1 : i32, i32
  }
  func.func @transform_3(%arg0: i32, %arg1: i32) -> (i32, i32) {
    %c0_i32 = arith.constant 0 : i32
    %c0_i32_0 = arith.constant 0 : i32
    return %arg1, %c0_i32 : i32, i32
  }
  func.func @transform_4(%arg0: i32, %arg1: i32) -> (i32, i32) {
    %c0_i32 = arith.constant 0 : i32
    %c0_i32_0 = arith.constant 0 : i32
    %c0_i32_1 = arith.constant 0 : i32
    return %c0_i32, %c0_i32_0 : i32, i32
  }
  func.func @transform_5(%arg0: i32, %arg1: i32) -> (i32, i32) {
    %c0_i32 = arith.constant 0 : i32
    %c0_i32_0 = arith.constant 0 : i32
    return %arg0, %c0_i32 : i32, i32
  }
}

</mosaic_0001>

<llo_original>
// kernel: tpu_custom_call.1
$region0: #{tpu_custom_call.1}
  #allocation0 [shape = 'u32[]', space=smem, size = 0x4, offset = 0x4, fixed_abs, tag = 'smem constant byte address 0x4 - core index']
  #allocation1 [shape = 'u32[72,128]{1,0:T(1,128)}', space=vmem, size = 0x9000, scoped, tag = 'internal scratch']
  #allocation2 [shape = 'f32[256,128]{1,0:T(8,128)}', space=vmem, size = 0x20000, scoped, tag = 'scratch operand']
  %s0 = inlined_call_operand.hbm [shape: f32[512,128], index: 0, kind: input, shape index: {}]
  %s1 = inlined_call_operand.hbm [shape: f32[128,512], index: 1, kind: input, shape index: {}]
  %s2 = inlined_call_operand.hbm [shape: f32[1,512], index: 2, kind: input, shape index: {}]
  %s3 = inlined_call_operand.hbm [shape: f32[512,128], index: 3, kind: input, shape index: {}]
  %s4 = inlined_call_operand.vmem [shape: f32[1,128], index: 4, kind: input, shape index: {}]
  %s5 = inlined_call_operand.hbm [shape: f32[512,128], index: 5, kind: output, shape index: {}]
  %s6 = sld [smem:[#allocation0]]
  $region77: #{tpu_custom_call.1} parent=0
    _
  %s8 = ssub.s32 1, %s6
  %s9 = scalar_select 0, %s8, %s6
  $region1: #{tpu_custom_call.1} parent=0
    #allocation3 [shape = 'u8[262144]{0}', space=vmem, size = 0x40000, scoped, tag = 'input window, operand 0']
    #allocation4 [shape = 's32[2]{0}', space=sflag, size = 0x8, scoped, tag = 'scoped memory for tpu_custom_call.1']
    #allocation5 [shape = 's32[2]{0}', space=sflag, size = 0x8, scoped, tag = 'scoped memory for tpu_custom_call.1']
    #allocation6 [shape = 'u8[262144]{0}', space=vmem, size = 0x40000, scoped, tag = 'input window, operand 1']
    #allocation7 [shape = 's32[2]{0}', space=sflag, size = 0x8, scoped, tag = 'scoped memory for tpu_custom_call.1']
    #allocation8 [shape = 'u8[2048]{0}', space=vmem, size = 0x800, scoped, tag = 'input window, operand 2']
    #allocation9 [shape = 'u8[262144]{0}', space=vmem, size = 0x40000, scoped, tag = 'input window, operand 3']
    #allocation10 [shape = 's32[2]{0}', space=sflag, size = 0x8, scoped, tag = 'scoped memory for tpu_custom_call.1']
    #allocation11 [shape = 'u8[262144]{0}', space=vmem, size = 0x40000, scoped, tag = 'output window, operand 0']
    %10 = vsyncpa [#allocation4], 0
    %s11 = scalar_lea.sflag [#allocation4], 1
    %12 = vsyncpa %s11, 0
    %13 = vsyncpa [#allocation7], 0
    %s14 = scalar_lea.sflag [#allocation7], 1
    %15 = vsyncpa %s14, 0
    %16 = vsyncpa [#allocation10], 0
    %s17 = scalar_lea.sflag [#allocation10], 1
    %18 = vsyncpa %s17, 0
    %19 = vsyncpa [#allocation5], 0
    %s20 = scalar_lea.sflag [#allocation5], 1
    %21 = vsyncpa %s20, 0
    loop: start=0, step=1, limit=6
    $region2: #{tpu_custom_call.1} parent=1 // loop_pre_header
      _
    $region3: #{tpu_custom_call.1} parent=1 // loop_header
      %s23 = sphi 0, %s27
      %p24 = scmp.ge.s32.totalorder %s23, 6
      %s30 = sphi 0, %s42
      %s31 = sphi 0, %s38
      %s32 = sphi 0, %s30
      %s33 = sphi 0, %s31
      %s34 = sphi 0, %s32
      %s35 = sphi 0, %s33
      %s45 = sphi 0, %s47
      %s48 = sphi 0, %s45
      %s49 = sphi 0, %s48
      %s65 = sphi 0, %s49
      %s71 = sphi 0, %s73
      %s74 = sphi 0, %s71
      %s75 = sphi 0, %s74
      %s91 = sphi 0, %s75
      %s97 = sphi 0, %s99
      %s100 = sphi 0, %s97
      %s101 = sphi 0, %s100
      %s117 = sphi 0, %s101
      %s123 = sphi 0, %s125
      %s126 = sphi 0, %s123
      %s127 = sphi 0, %s126
      %s143 = sphi 0, %s127
      %s147 = sphi 0, %s147
      %s149 = sphi 0, %s147
      %s150 = sphi 0, %s149
      %s164 = sphi 0, %s150
      %s170 = sphi 0, %s172
      %s173 = sphi 0, %s170
      %s174 = sphi 0, %s173
      %s190 = sphi 0, %s174
    $region4: #{tpu_custom_call.1} parent=1 // loop_header_branch
      %26 = sbr.rel (%p24) target = $region8
    $region5: #{tpu_custom_call.1} parent=1 // loop_body
      %s28 = ssub.s32 %s23, 1
      %s29 = ssub.s32 %s23, 2
      %s36 = sadd.s32 1, %s31
      %p37 = scmp.ge.s32.totalorder %s36, 2
      %s38 = scalar_select %p37, 0, %s36
      %s39 = sadd.s32 1, %s30
      %s40 = scalar_select %p37, %s39, %s30
      %p41 = scmp.ge.s32.totalorder %s40, 2
      %s42 = scalar_select %p41, 0, %s40
      %s43 = ssub.s32 %s30, %s42
      %p44 = scmp.eq.s32.totalorder %s43, 0
      %s46 = sadd.s32 %s45, 1
      %s47 = scalar_select %p44, %s45, %s46
      %p50 = pneg %p44
      %p51 = scmp.eq.s32.totalorder %s23, 3
      %p52 = por %p50, %p51
      %p53 = scmp.ne.s32.totalorder %s45, %s48
      %p54 = scmp.eq.s32.totalorder %s23, 0
      %p55 = por %p53, %p54
      %p56 = scmp.ne.s32.totalorder %s45, %s48
      %p57 = scmp.eq.s32.totalorder %s28, 3
      %p58 = por %p56, %p57
      %p59 = scmp.ne.s32.totalorder %s48, %s49
      %p60 = scmp.eq.s32.totalorder %s28, 0
      %p61 = por %p59, %p60
      %p62 = scmp.ne.s32.totalorder %s48, %s49
      %p63 = scmp.eq.s32.totalorder %s29, 3
      %p64 = por %p62, %p63
      %p66 = scmp.ne.s32.totalorder %s49, %s65
      %p67 = scmp.eq.s32.totalorder %s29, 0
      %p68 = por %p66, %p67
      %s69 = ssub.s32 %s31, %s38
      %p70 = scmp.eq.s32.totalorder %s69, 0
      %s72 = sadd.s32 %s71, 1
      %s73 = scalar_select %p70, %s71, %s72
      %p76 = pneg %p70
      %p77 = scmp.eq.s32.totalorder %s23, 3
      %p78 = por %p76, %p77
      %p79 = scmp.ne.s32.totalorder %s71, %s74
      %p80 = scmp.eq.s32.totalorder %s23, 0
      %p81 = por %p79, %p80
      %p82 = scmp.ne.s32.totalorder %s71, %s74
      %p83 = scmp.eq.s32.totalorder %s28, 3
      %p84 = por %p82, %p83
      %p85 = scmp.ne.s32.totalorder %s74, %s75
      %p86 = scmp.eq.s32.totalorder %s28, 0
      %p87 = por %p85, %p86
      %p88 = scmp.ne.s32.totalorder %s74, %s75
      %p89 = scmp.eq.s32.totalorder %s29, 3
      %p90 = por %p88, %p89
      %p92 = scmp.ne.s32.totalorder %s75, %s91
      %p93 = scmp.eq.s32.totalorder %s29, 0
      %p94 = por %p92, %p93
      %s95 = ssub.s32 %s31, %s38
      %p96 = scmp.eq.s32.totalorder %s95, 0
      %s98 = sadd.s32 %s97, 1
      %s99 = scalar_select %p96, %s97, %s98
      %p102 = pneg %p96
      %p103 = scmp.eq.s32.totalorder %s23, 3
      %p104 = por %p102, %p103
      %p105 = scmp.ne.s32.totalorder %s97, %s100
      %p106 = scmp.eq.s32.totalorder %s23, 0
      %p107 = por %p105, %p106
      %p108 = scmp.ne.s32.totalorder %s97, %s100
      %p109 = scmp.eq.s32.totalorder %s28, 3
      %p110 = por %p108, %p109
      %p111 = scmp.ne.s32.totalorder %s100, %s101
      %p112 = scmp.eq.s32.totalorder %s28, 0
      %p113 = por %p111, %p112
      %p114 = scmp.ne.s32.totalorder %s100, %s101
      %p115 = scmp.eq.s32.totalorder %s29, 3
      %p116 = por %p114, %p115
      %p118 = scmp.ne.s32.totalorder %s101, %s117
      %p119 = scmp.eq.s32.totalorder %s29, 0
      %p120 = por %p118, %p119
      %s121 = ssub.s32 %s31, %s38
      %p122 = scmp.eq.s32.totalorder %s121, 0
      %s124 = sadd.s32 %s123, 1
      %s125 = scalar_select %p122, %s123, %s124
      %p128 = pneg %p122
      %p129 = scmp.eq.s32.totalorder %s23, 3
      %p130 = por %p128, %p129
      %p131 = scmp.ne.s32.totalorder %s123, %s126
      %p132 = scmp.eq.s32.totalorder %s23, 0
      %p133 = por %p131, %p132
      %p134 = scmp.ne.s32.totalorder %s123, %s126
      %p135 = scmp.eq.s32.totalorder %s28, 3
      %p136 = por %p134, %p135
      %p137 = scmp.ne.s32.totalorder %s126, %s127
      %p138 = scmp.eq.s32.totalorder %s28, 0
      %p139 = por %p137, %p138
      %p140 = scmp.ne.s32.totalorder %s126, %s127
      %p141 = scmp.eq.s32.totalorder %s29, 3
      %p142 = por %p140, %p141
      %p144 = scmp.ne.s32.totalorder %s127, %s143
      %p145 = scmp.eq.s32.totalorder %s29, 0
      %p146 = por %p144, %p145
      %s148 = sadd.s32 %s147, 1
      %p151 = scmp.eq.s32.totalorder %s23, 3
      %p152 = scmp.ne.s32.totalorder %s147, %s149
      %p153 = scmp.eq.s32.totalorder %s23, 0
      %p154 = por %p152, %p153
      %p155 = scmp.ne.s32.totalorder %s147, %s149
      %p156 = scmp.eq.s32.totalorder %s28, 3
      %p157 = por %p155, %p156
      %p158 = scmp.ne.s32.totalorder %s149, %s150
      %p159 = scmp.eq.s32.totalorder %s28, 0
      %p160 = por %p158, %p159
      %p161 = scmp.ne.s32.totalorder %s149, %s150
      %p162 = scmp.eq.s32.totalorder %s29, 3
      %p163 = por %p161, %p162
      %p165 = scmp.ne.s32.totalorder %s150, %s164
      %p166 = scmp.eq.s32.totalorder %s29, 0
      %p167 = por %p165, %p166
      %s168 = ssub.s32 %s30, %s42
      %p169 = scmp.eq.s32.totalorder %s168, 0
      %s171 = sadd.s32 %s170, 1
      %s172 = scalar_select %p169, %s170, %s171
      %p175 = pneg %p169
      %p176 = scmp.eq.s32.totalorder %s23, 3
      %p177 = por %p175, %p176
      %p178 = scmp.ne.s32.totalorder %s170, %s173
      %p179 = scmp.eq.s32.totalorder %s23, 0
      %p180 = por %p178, %p179
      %p181 = scmp.ne.s32.totalorder %s170, %s173
      %p182 = scmp.eq.s32.totalorder %s28, 3
      %p183 = por %p181, %p182
      %p184 = scmp.ne.s32.totalorder %s173, %s174
      %p185 = scmp.eq.s32.totalorder %s28, 0
      %p186 = por %p184, %p185
      %p187 = scmp.ne.s32.totalorder %s173, %s174
      %p188 = scmp.eq.s32.totalorder %s29, 3
      %p189 = por %p187, %p188
      %p191 = scmp.ne.s32.totalorder %s174, %s190
      %p192 = scmp.eq.s32.totalorder %s29, 0
      %p193 = por %p191, %p192
      %p194 = scmp.le.s32.totalorder 1, %s23
      %p195 = scmp.lt.s32.totalorder %s23, 5
      %p196 = pnand %p194, %p195
      %p197 = pneg %p196
      // Predicated region
      $region9: #{tpu_custom_call.1} parent=5 // pred_check
        _
      $region10: #{tpu_custom_call.1} parent=5 // pred_check_branch
        %199 = sbr.rel (%p196) target = $region12
      $region11: #{tpu_custom_call.1} parent=5 // pred_region
        %s200 = ssub.s32 %s23, 1
        // Predicated region
        $region13: #{tpu_custom_call.1} parent=11 // pred_check
          %p201 = pneg %p160
        $region14: #{tpu_custom_call.1} parent=11 // pred_check_branch
          %203 = sbr.rel (%p201) target = $region16
        $region15: #{tpu_custom_call.1} parent=11 // pred_region
          _
        $region16: #{tpu_custom_call.1} parent=11 // pred_fallthru
          _
      $region12: #{tpu_custom_call.1} parent=5 // pred_fallthru
        _
      %p204 = scmp.lt.s32.totalorder %s23, 4
      // Predicated region
      $region17: #{tpu_custom_call.1} parent=5 // pred_check
        %p205 = pneg %p204
      $region18: #{tpu_custom_call.1} parent=5 // pred_check_branch
        %207 = sbr.rel (%p205) target = $region20
      $region19: #{tpu_custom_call.1} parent=5 // pred_region
        // Predicated region
        $region21: #{tpu_custom_call.1} parent=19 // pred_check
          %p208 = pneg %p55
        $region22: #{tpu_custom_call.1} parent=19 // pred_check_branch
          %210 = sbr.rel (%p208) target = $region24
        $region23: #{tpu_custom_call.1} parent=19 // pred_region
          %s211 = sand.u32 %s45, 1
          %s212 = scalar_lea.sflag [#allocation4], %s211
          %s213 = sand.u32 %s45, 1
          %s214 = smul.addr %s213, 256
          %s215 = scalar_lea.vmem [#allocation3], %s214
          %s216 = smul.u32 32, %s30
          %218 = vsyncadd %s212, 0
          %s219 = smul.addr %s216, 8
          %s220 = scalar_lea.hbm %s0, %s219
          %s221 = sshll.u32 %s220, 4
          %s222 = int_to_ptr.hbm [resolvable:$true] %s221
          %s223 = sshll.u32 %s215, 4
          %s224 = int_to_ptr.vmem [resolvable:$true] %s223
          %229 = dma.hbm_to_vmem [thread:$0]  %s222, 4096, %s224, %s212, 128, 128, 8
        $region24: #{tpu_custom_call.1} parent=19 // pred_fallthru
          _
        // Predicated region
        $region25: #{tpu_custom_call.1} parent=19 // pred_check
          %p230 = pneg %p81
        $region26: #{tpu_custom_call.1} parent=19 // pred_check_branch
          %232 = sbr.rel (%p230) target = $region28
        $region27: #{tpu_custom_call.1} parent=19 // pred_region
          %s233 = sand.u32 %s23, 1
          %s234 = scalar_lea.sflag [#allocation7], %s233
          %s235 = sand.u32 %s71, 1
          %s236 = smul.addr %s235, 256
          %s237 = scalar_lea.vmem [#allocation6], %s236
          %s238 = smul.u32 2, %s31
          %240 = vsyncadd %s234, 0
          %s241 = smul.addr %s238, 8
          %s242 = scalar_lea.hbm %s1, %s241
          %s243 = sshll.u32 %s242, 4
          %s244 = int_to_ptr.hbm [resolvable:$true] %s243
          %s245 = sshll.u32 %s237, 4
          %s246 = int_to_ptr.vmem [resolvable:$true] %s245
          %251 = dma.hbm_to_vmem [thread:$0]  %s244, 4096, %s246, %s234, 512, 256, 16
        $region28: #{tpu_custom_call.1} parent=19 // pred_fallthru
          _
        // Predicated region
        $region29: #{tpu_custom_call.1} parent=19 // pred_check
          %p252 = pneg %p107
        $region30: #{tpu_custom_call.1} parent=19 // pred_check_branch
          %254 = sbr.rel (%p252) target = $region32
        $region31: #{tpu_custom_call.1} parent=19 // pred_region
          %s255 = sand.u32 %s23, 1
          %s256 = scalar_lea.sflag [#allocation7], %s255
          %s257 = sand.u32 %s97, 1
          %s258 = smul.addr %s257, 2
          %s259 = scalar_lea.vmem [#allocation8], %s258
          %s260 = smul.u32 2, %s31
          %262 = vsyncadd %s256, 0
          %s263 = scalar_lea.hbm %s2, %s260
          %s265 = sshll.u32 %s263, 4
          %s266 = int_to_ptr.hbm [resolvable:$true] %s265
          %s267 = sshll.u32 %s259, 4
          %s268 = int_to_ptr.vmem [resolvable:$true] %s267
          %270 = dma.hbm_to_vmem [thread:$0]  %s266, 32, %s268, %s256
        $region32: #{tpu_custom_call.1} parent=19 // pred_fallthru
          _
        // Predicated region
        $region33: #{tpu_custom_call.1} parent=19 // pred_check
          %p271 = pneg %p133
        $region34: #{tpu_custom_call.1} parent=19 // pred_check_branch
          %273 = sbr.rel (%p271) target = $region36
        $region35: #{tpu_custom_call.1} parent=19 // pred_region
          %s274 = sand.u32 %s123, 1
          %s275 = scalar_lea.sflag [#allocation10], %s274
          %s276 = sand.u32 %s123, 1
          %s277 = smul.addr %s276, 256
          %s278 = scalar_lea.vmem [#allocation9], %s277
          %s279 = smul.u32 32, %s31
          %281 = vsyncadd %s275, 0
          %s282 = smul.addr %s279, 8
          %s283 = scalar_lea.hbm %s3, %s282
          %s284 = sshll.u32 %s283, 4
          %s285 = int_to_ptr.hbm [resolvable:$true] %s284
          %s286 = sshll.u32 %s278, 4
          %s287 = int_to_ptr.vmem [resolvable:$true] %s286
          %292 = dma.hbm_to_vmem [thread:$0]  %s285, 4096, %s287, %s275, 128, 128, 8
        $region36: #{tpu_custom_call.1} parent=19 // pred_fallthru
          _
      $region20: #{tpu_custom_call.1} parent=5 // pred_fallthru
        _
      %p293 = scmp.le.s32.totalorder 1, %s23
      %p294 = scmp.lt.s32.totalorder %s23, 5
      %p295 = pnand %p293, %p294
      %p296 = pneg %p295
      // Predicated region
      $region37: #{tpu_custom_call.1} parent=5 // pred_check
        _
      $region38: #{tpu_custom_call.1} parent=5 // pred_check_branch
        %298 = sbr.rel (%p295) target = $region40
      $region39: #{tpu_custom_call.1} parent=5 // pred_region
        %s299 = ssub.s32 %s23, 1
        %s300 = sand.u32 %s48, 1
        %s301 = scalar_lea.sflag [#allocation4], %s300
        %s302 = sand.u32 %s48, 1
        %s303 = smul.addr %s302, 256
        %s304 = scalar_lea.vmem [#allocation3], %s303
        // Predicated region
        $region41: #{tpu_custom_call.1} parent=39 // pred_check
          %p305 = pneg %p61
        $region42: #{tpu_custom_call.1} parent=39 // pred_check_branch
          %307 = sbr.rel (%p305) target = $region44
        $region43: #{tpu_custom_call.1} parent=39 // pred_region
          %309 = dma.done %s301, 4096
        $region44: #{tpu_custom_call.1} parent=39 // pred_fallthru
          _
        %s310 = sand.u32 %s28, 1
        %s311 = scalar_lea.sflag [#allocation7], %s310
        %s312 = sand.u32 %s74, 1
        %s313 = smul.addr %s312, 256
        %s314 = scalar_lea.vmem [#allocation6], %s313
        // Predicated region
        $region45: #{tpu_custom_call.1} parent=39 // pred_check
          %p315 = pneg %p87
        $region46: #{tpu_custom_call.1} parent=39 // pred_check_branch
          %317 = sbr.rel (%p315) target = $region48
        $region47: #{tpu_custom_call.1} parent=39 // pred_region
          %319 = dma.done %s311, 4096
        $region48: #{tpu_custom_call.1} parent=39 // pred_fallthru
          _
        %s320 = sand.u32 %s28, 1
        %s321 = scalar_lea.sflag [#allocation7], %s320
        %s322 = sand.u32 %s100, 1
        %s323 = smul.addr %s322, 2
        %s324 = scalar_lea.vmem [#allocation8], %s323
        // Predicated region
        $region49: #{tpu_custom_call.1} parent=39 // pred_check
          %p325 = pneg %p113
        $region50: #{tpu_custom_call.1} parent=39 // pred_check_branch
          %327 = sbr.rel (%p325) target = $region52
        $region51: #{tpu_custom_call.1} parent=39 // pred_region
          %329 = dma.done %s321, 32
        $region52: #{tpu_custom_call.1} parent=39 // pred_fallthru
          _
        %s330 = sand.u32 %s126, 1
        %s331 = scalar_lea.sflag [#allocation10], %s330
        %s332 = sand.u32 %s126, 1
        %s333 = smul.addr %s332, 256
        %s334 = scalar_lea.vmem [#allocation9], %s333
        // Predicated region
        $region53: #{tpu_custom_call.1} parent=39 // pred_check
          %p335 = pneg %p139
        $region54: #{tpu_custom_call.1} parent=39 // pred_check_branch
          %337 = sbr.rel (%p335) target = $region56
        $region55: #{tpu_custom_call.1} parent=39 // pred_region
          %339 = dma.done %s331, 4096
        $region56: #{tpu_custom_call.1} parent=39 // pred_fallthru
          _
        %s340 = sand.u32 %s48, 1
        %s341 = scalar_lea.sflag [#allocation4], %s340
        %s342 = sand.u32 %s48, 1
        %s343 = smul.addr %s342, 256
        %s344 = scalar_lea.vmem [#allocation3], %s343
        %p345 = pneg %p61
        %p346 = pneg %p58
        %s347 = sand.u32 %s28, 1
        %s348 = scalar_lea.sflag [#allocation7], %s347
        %s349 = sand.u32 %s74, 1
        %s350 = smul.addr %s349, 256
        %s351 = scalar_lea.vmem [#allocation6], %s350
        %p352 = pneg %p87
        %p353 = pneg %p84
        %s354 = sand.u32 %s28, 1
        %s355 = scalar_lea.sflag [#allocation7], %s354
        %s356 = sand.u32 %s100, 1
        %s357 = smul.addr %s356, 2
        %s358 = scalar_lea.vmem [#allocation8], %s357
        %p359 = pneg %p113
        %p360 = pneg %p110
        %s361 = sand.u32 %s126, 1
        %s362 = scalar_lea.sflag [#allocation10], %s361
        %s363 = sand.u32 %s126, 1
        %s364 = smul.addr %s363, 256
        %s365 = scalar_lea.vmem [#allocation9], %s364
        %p366 = pneg %p139
        %p367 = pneg %p136
        %p368 = pneg %p160
        %p369 = pneg %p157
        %p370 = pneg %p186
        %p371 = pneg %p183
        %s372 = sand.u32 %s173, 1
        %s373 = scalar_lea.sflag [#allocation5], %s372
        %s374 = sand.u32 %s173, 1
        %s375 = smul.addr %s374, 256
        %s376 = scalar_lea.vmem [#allocation11], %s375
        %s377 = smul.u32 32, %s32
        %s378 = smul.u32 2, %s33
        %s379 = smul.u32 2, %s33
        %s380 = smul.u32 32, %s33
        %s381 = smul.u32 32, %s32
        %p382 = scmp.eq.s32.totalorder %s33, 0
        // Predicated region
        $region57: #{tpu_custom_call.1} parent=39 // pred_check
          %p383 = pneg %p382
        $region58: #{tpu_custom_call.1} parent=39 // pred_check_branch
          %385 = sbr.rel (%p383) target = $region60
        $region59: #{tpu_custom_call.1} parent=39 // pred_region
          %386 = vst [vmem:[#allocation2] sm:$0xff] 0.0
          %387 = vst [vmem:[#allocation2 + $0x8] sm:$0xff] 0.0
          %388 = vst [vmem:[#allocation2 + $0x10] sm:$0xff] 0.0
          %389 = vst [vmem:[#allocation2 + $0x18] sm:$0xff] 0.0
          %390 = vst [vmem:[#allocation2 + $0x20] sm:$0xff] 0.0
          %391 = vst [vmem:[#allocation2 + $0x28] sm:$0xff] 0.0
          %392 = vst [vmem:[#allocation2 + $0x30] sm:$0xff] 0.0
          %393 = vst [vmem:[#allocation2 + $0x38] sm:$0xff] 0.0
          %394 = vst [vmem:[#allocation2 + $0x40] sm:$0xff] 0.0
          %395 = vst [vmem:[#allocation2 + $0x48] sm:$0xff] 0.0
          %396 = vst [vmem:[#allocation2 + $0x50] sm:$0xff] 0.0
          %397 = vst [vmem:[#allocation2 + $0x58] sm:$0xff] 0.0
          %398 = vst [vmem:[#allocation2 + $0x60] sm:$0xff] 0.0
          %399 = vst [vmem:[#allocation2 + $0x68] sm:$0xff] 0.0
          %400 = vst [vmem:[#allocation2 + $0x70] sm:$0xff] 0.0
          %401 = vst [vmem:[#allocation2 + $0x78] sm:$0xff] 0.0
          %402 = vst [vmem:[#allocation2 + $0x80] sm:$0xff] 0.0
          %403 = vst [vmem:[#allocation2 + $0x88] sm:$0xff] 0.0
          %404 = vst [vmem:[#allocation2 + $0x90] sm:$0xff] 0.0
          %405 = vst [vmem:[#allocation2 + $0x98] sm:$0xff] 0.0
          %406 = vst [vmem:[#allocation2 + $0xa0] sm:$0xff] 0.0
          %407 = vst [vmem:[#allocation2 + $0xa8] sm:$0xff] 0.0
          %408 = vst [vmem:[#allocation2 + $0xb0] sm:$0xff] 0.0
          %409 = vst [vmem:[#allocation2 + $0xb8] sm:$0xff] 0.0
          %410 = vst [vmem:[#allocation2 + $0xc0] sm:$0xff] 0.0
          %411 = vst [vmem:[#allocation2 + $0xc8] sm:$0xff] 0.0
          %412 = vst [vmem:[#allocation2 + $0xd0] sm:$0xff] 0.0
          %413 = vst [vmem:[#allocation2 + $0xd8] sm:$0xff] 0.0
          %414 = vst [vmem:[#allocation2 + $0xe0] sm:$0xff] 0.0
          %415 = vst [vmem:[#allocation2 + $0xe8] sm:$0xff] 0.0
          %416 = vst [vmem:[#allocation2 + $0xf0] sm:$0xff] 0.0
          %417 = vst [vmem:[#allocation2 + $0xf8] sm:$0xff] 0.0
        $region60: #{tpu_custom_call.1} parent=39 // pred_fallthru
          _
        %v418 = vld [vmem:[%s304] sm:$0xff]
        %v419 = vld [vmem:[%s304 + $0x8] sm:$0xff]
        %v420 = vld [vmem:[%s304 + $0x10] sm:$0xff]
        %v421 = vld [vmem:[%s304 + $0x18] sm:$0xff]
        %v422 = vld [vmem:[%s304 + $0x20] sm:$0xff]
        %v423 = vld [vmem:[%s304 + $0x28] sm:$0xff]
        %v424 = vld [vmem:[%s304 + $0x30] sm:$0xff]
        %v425 = vld [vmem:[%s304 + $0x38] sm:$0xff]
        %v426 = vld [vmem:[%s304 + $0x40] sm:$0xff]
        %v427 = vld [vmem:[%s304 + $0x48] sm:$0xff]
        %v428 = vld [vmem:[%s304 + $0x50] sm:$0xff]
        %v429 = vld [vmem:[%s304 + $0x58] sm:$0xff]
        %v430 = vld [vmem:[%s304 + $0x60] sm:$0xff]
        %v431 = vld [vmem:[%s304 + $0x68] sm:$0xff]
        %v432 = vld [vmem:[%s304 + $0x70] sm:$0xff]
        %v433 = vld [vmem:[%s304 + $0x78] sm:$0xff]
        %v434 = vld [vmem:[%s304 + $0x80] sm:$0xff]
        %v435 = vld [vmem:[%s304 + $0x88] sm:$0xff]
        %v436 = vld [vmem:[%s304 + $0x90] sm:$0xff]
        %v437 = vld [vmem:[%s304 + $0x98] sm:$0xff]
        %v438 = vld [vmem:[%s304 + $0xa0] sm:$0xff]
        %v439 = vld [vmem:[%s304 + $0xa8] sm:$0xff]
        %v440 = vld [vmem:[%s304 + $0xb0] sm:$0xff]
        %v441 = vld [vmem:[%s304 + $0xb8] sm:$0xff]
        %v442 = vld [vmem:[%s304 + $0xc0] sm:$0xff]
        %v443 = vld [vmem:[%s304 + $0xc8] sm:$0xff]
        %v444 = vld [vmem:[%s304 + $0xd0] sm:$0xff]
        %v445 = vld [vmem:[%s304 + $0xd8] sm:$0xff]
        %v446 = vld [vmem:[%s304 + $0xe0] sm:$0xff]
        %v447 = vld [vmem:[%s304 + $0xe8] sm:$0xff]
        %v448 = vld [vmem:[%s304 + $0xf0] sm:$0xff]
        %v449 = vld [vmem:[%s304 + $0xf8] sm:$0xff]
        %v450 = vld [vmem:[%s314] sm:$0xff]
        %v451 = vld [vmem:[%s314 + $0x8] sm:$0xff]
        %v452 = vld [vmem:[%s314 + $0x10] sm:$0xff]
        %v453 = vld [vmem:[%s314 + $0x18] sm:$0xff]
        %v454 = vld [vmem:[%s314 + $0x20] sm:$0xff]
        %v455 = vld [vmem:[%s314 + $0x28] sm:$0xff]
        %v456 = vld [vmem:[%s314 + $0x30] sm:$0xff]
        %v457 = vld [vmem:[%s314 + $0x38] sm:$0xff]
        %v458 = vld [vmem:[%s314 + $0x40] sm:$0xff]
        %v459 = vld [vmem:[%s314 + $0x48] sm:$0xff]
        %v460 = vld [vmem:[%s314 + $0x50] sm:$0xff]
        %v461 = vld [vmem:[%s314 + $0x58] sm:$0xff]
        %v462 = vld [vmem:[%s314 + $0x60] sm:$0xff]
        %v463 = vld [vmem:[%s314 + $0x68] sm:$0xff]
        %v464 = vld [vmem:[%s314 + $0x70] sm:$0xff]
        %v465 = vld [vmem:[%s314 + $0x78] sm:$0xff]
        %v466 = vld [vmem:[%s314 + $0x80] sm:$0xff]
        %v467 = vld [vmem:[%s314 + $0x88] sm:$0xff]
        %v468 = vld [vmem:[%s314 + $0x90] sm:$0xff]
        %v469 = vld [vmem:[%s314 + $0x98] sm:$0xff]
        %v470 = vld [vmem:[%s314 + $0xa0] sm:$0xff]
        %v471 = vld [vmem:[%s314 + $0xa8] sm:$0xff]
        %v472 = vld [vmem:[%s314 + $0xb0] sm:$0xff]
        %v473 = vld [vmem:[%s314 + $0xb8] sm:$0xff]
        %v474 = vld [vmem:[%s314 + $0xc0] sm:$0xff]
        %v475 = vld [vmem:[%s314 + $0xc8] sm:$0xff]
        %v476 = vld [vmem:[%s314 + $0xd0] sm:$0xff]
        %v477 = vld [vmem:[%s314 + $0xd8] sm:$0xff]
        %v478 = vld [vmem:[%s314 + $0xe0] sm:$0xff]
        %v479 = vld [vmem:[%s314 + $0xe8] sm:$0xff]
        %v480 = vld [vmem:[%s314 + $0xf0] sm:$0xff]
        %v481 = vld [vmem:[%s314 + $0xf8] sm:$0xff]
        %v482 = vld [vmem:[%s324] sm:$0x3]
        %v484 = vperm.slane %v482, 0
        %v485 = vperm.slane %v482, 1
        %488 = vmatpush.msra.mxu0 %v480
        %489 = vmatpush.msra.mxu0 %v478
        %490 = vmatpush.msra.mxu0 %v476
        %491 = vmatpush.msra.mxu0 %v474
        %492 = vmatpush.msra.mxu0 %v472
        %493 = vmatpush.msra.mxu0 %v470
        %494 = vmatpush.msra.mxu0 %v468
        %495 = vmatpush.msra.mxu0 %v466
        %496 = vmatpush.msra.mxu0 %v464
        %497 = vmatpush.msra.mxu0 %v462
        %498 = vmatpush.msra.mxu0 %v460
        %499 = vmatpush.msra.mxu0 %v458
        %500 = vmatpush.msra.mxu0 %v456
        %501 = vmatpush.msra.mxu0 %v454
        %502 = vmatpush.msra.mxu0 %v452
        %503 = vmatpush.msra.mxu0 %v450
        %504 = vmatmul.f32.gmra.mxu0 %v418
        %v505 = vpop.f32.mrf.mxu0
        %v506 = vadd.f32 %v484, %v505
        %507 = vmatmul.f32.gmra.mxu0 %v419
        %v508 = vpop.f32.mrf.mxu0
        %v509 = vadd.f32 %v484, %v508
        %510 = vmatmul.f32.gmra.mxu0 %v420
        %v511 = vpop.f32.mrf.mxu0
        %v512 = vadd.f32 %v484, %v511
        %513 = vmatmul.f32.gmra.mxu0 %v421
        %v514 = vpop.f32.mrf.mxu0
        %v515 = vadd.f32 %v484, %v514
        %516 = vmatmul.f32.gmra.mxu0 %v422
        %v517 = vpop.f32.mrf.mxu0
        %v518 = vadd.f32 %v484, %v517
        %519 = vmatmul.f32.gmra.mxu0 %v423
        %v520 = vpop.f32.mrf.mxu0
        %v521 = vadd.f32 %v484, %v520
        %522 = vmatmul.f32.gmra.mxu0 %v424
        %v523 = vpop.f32.mrf.mxu0
        %v524 = vadd.f32 %v484, %v523
        %525 = vmatmul.f32.gmra.mxu0 %v425
        %v526 = vpop.f32.mrf.mxu0
        %v527 = vadd.f32 %v484, %v526
        %528 = vmatmul.f32.gmra.mxu0 %v426
        %v529 = vpop.f32.mrf.mxu0
        %v530 = vadd.f32 %v484, %v529
        %531 = vmatmul.f32.gmra.mxu0 %v427
        %v532 = vpop.f32.mrf.mxu0
        %v533 = vadd.f32 %v484, %v532
        %534 = vmatmul.f32.gmra.mxu0 %v428
        %v535 = vpop.f32.mrf.mxu0
        %v536 = vadd.f32 %v484, %v535
        %537 = vmatmul.f32.gmra.mxu0 %v429
        %v538 = vpop.f32.mrf.mxu0
        %v539 = vadd.f32 %v484, %v538
        %540 = vmatmul.f32.gmra.mxu0 %v430
        %v541 = vpop.f32.mrf.mxu0
        %v542 = vadd.f32 %v484, %v541
        %543 = vmatmul.f32.gmra.mxu0 %v431
        %v544 = vpop.f32.mrf.mxu0
        %v545 = vadd.f32 %v484, %v544
        %546 = vmatmul.f32.gmra.mxu0 %v432
        %v547 = vpop.f32.mrf.mxu0
        %v548 = vadd.f32 %v484, %v547
        %549 = vmatmul.f32.gmra.mxu0 %v433
        %v550 = vpop.f32.mrf.mxu0
        %v551 = vadd.f32 %v484, %v550
        %552 = vmatmul.f32.gmra.mxu0 %v434
        %v553 = vpop.f32.mrf.mxu0
        %v554 = vadd.f32 %v484, %v553
        %555 = vmatmul.f32.gmra.mxu0 %v435
        %v556 = vpop.f32.mrf.mxu0
        %v557 = vadd.f32 %v484, %v556
        %558 = vmatmul.f32.gmra.mxu0 %v436
        %v559 = vpop.f32.mrf.mxu0
        %v560 = vadd.f32 %v484, %v559
        %561 = vmatmul.f32.gmra.mxu0 %v437
        %v562 = vpop.f32.mrf.mxu0
        %v563 = vadd.f32 %v484, %v562
        %564 = vmatmul.f32.gmra.mxu0 %v438
        %v565 = vpop.f32.mrf.mxu0
        %v566 = vadd.f32 %v484, %v565
        %567 = vmatmul.f32.gmra.mxu0 %v439
        %v568 = vpop.f32.mrf.mxu0
        %v569 = vadd.f32 %v484, %v568
        %570 = vmatmul.f32.gmra.mxu0 %v440
        %v571 = vpop.f32.mrf.mxu0
        %v572 = vadd.f32 %v484, %v571
        %573 = vmatmul.f32.gmra.mxu0 %v441
        %v574 = vpop.f32.mrf.mxu0
        %v575 = vadd.f32 %v484, %v574
        %576 = vmatmul.f32.gmra.mxu0 %v442
        %v577 = vpop.f32.mrf.mxu0
        %v578 = vadd.f32 %v484, %v577
        %579 = vmatmul.f32.gmra.mxu0 %v443
        %v580 = vpop.f32.mrf.mxu0
        %v581 = vadd.f32 %v484, %v580
        %582 = vmatmul.f32.gmra.mxu0 %v444
        %v583 = vpop.f32.mrf.mxu0
        %v584 = vadd.f32 %v484, %v583
        %585 = vmatmul.f32.gmra.mxu0 %v445
        %v586 = vpop.f32.mrf.mxu0
        %v587 = vadd.f32 %v484, %v586
        %588 = vmatmul.f32.gmra.mxu0 %v446
        %v589 = vpop.f32.mrf.mxu0
        %v590 = vadd.f32 %v484, %v589
        %591 = vmatmul.f32.gmra.mxu0 %v447
        %v592 = vpop.f32.mrf.mxu0
        %v593 = vadd.f32 %v484, %v592
        %594 = vmatmul.f32.gmra.mxu0 %v448
        %v595 = vpop.f32.mrf.mxu0
        %v596 = vadd.f32 %v484, %v595
        %597 = vmatmul.f32.gmra.mxu0 %v449
        %v598 = vpop.f32.mrf.mxu0
        %v599 = vadd.f32 %v484, %v598
        %600 = vdwg.mxu0
        %601 = vmatpush.msra.mxu0 %v481
        %602 = vmatpush.msra.mxu0 %v479
        %603 = vmatpush.msra.mxu0 %v477
        %604 = vmatpush.msra.mxu0 %v475
        %605 = vmatpush.msra.mxu0 %v473
        %606 = vmatpush.msra.mxu0 %v471
        %607 = vmatpush.msra.mxu0 %v469
        %608 = vmatpush.msra.mxu0 %v467
        %609 = vmatpush.msra.mxu0 %v465
        %610 = vmatpush.msra.mxu0 %v463
        %611 = vmatpush.msra.mxu0 %v461
        %612 = vmatpush.msra.mxu0 %v459
        %613 = vmatpush.msra.mxu0 %v457
        %614 = vmatpush.msra.mxu0 %v455
        %615 = vmatpush.msra.mxu0 %v453
        %616 = vmatpush.msra.mxu0 %v451
        %617 = vmatmul.f32.gmra.mxu0 %v418
        %v618 = vpop.f32.mrf.mxu0
        %v619 = vadd.f32 %v485, %v618
        %620 = vmatmul.f32.gmra.mxu0 %v419
        %v621 = vpop.f32.mrf.mxu0
        %v622 = vadd.f32 %v485, %v621
        %623 = vmatmul.f32.gmra.mxu0 %v420
        %v624 = vpop.f32.mrf.mxu0
        %v625 = vadd.f32 %v485, %v624
        %626 = vmatmul.f32.gmra.mxu0 %v421
        %v627 = vpop.f32.mrf.mxu0
        %v628 = vadd.f32 %v485, %v627
        %629 = vmatmul.f32.gmra.mxu0 %v422
        %v630 = vpop.f32.mrf.mxu0
        %v631 = vadd.f32 %v485, %v630
        %632 = vmatmul.f32.gmra.mxu0 %v423
        %v633 = vpop.f32.mrf.mxu0
        %v634 = vadd.f32 %v485, %v633
        %635 = vmatmul.f32.gmra.mxu0 %v424
        %v636 = vpop.f32.mrf.mxu0
        %v637 = vadd.f32 %v485, %v636
        %638 = vmatmul.f32.gmra.mxu0 %v425
        %v639 = vpop.f32.mrf.mxu0
        %v640 = vadd.f32 %v485, %v639
        %641 = vmatmul.f32.gmra.mxu0 %v426
        %v642 = vpop.f32.mrf.mxu0
        %v643 = vadd.f32 %v485, %v642
        %644 = vmatmul.f32.gmra.mxu0 %v427
        %v645 = vpop.f32.mrf.mxu0
        %v646 = vadd.f32 %v485, %v645
        %647 = vmatmul.f32.gmra.mxu0 %v428
        %v648 = vpop.f32.mrf.mxu0
        %v649 = vadd.f32 %v485, %v648
        %650 = vmatmul.f32.gmra.mxu0 %v429
        %v651 = vpop.f32.mrf.mxu0
        %v652 = vadd.f32 %v485, %v651
        %653 = vmatmul.f32.gmra.mxu0 %v430
        %v654 = vpop.f32.mrf.mxu0
        %v655 = vadd.f32 %v485, %v654
        %656 = vmatmul.f32.gmra.mxu0 %v431
        %v657 = vpop.f32.mrf.mxu0
        %v658 = vadd.f32 %v485, %v657
        %659 = vmatmul.f32.gmra.mxu0 %v432
        %v660 = vpop.f32.mrf.mxu0
        %v661 = vadd.f32 %v485, %v660
        %662 = vmatmul.f32.gmra.mxu0 %v433
        %v663 = vpop.f32.mrf.mxu0
        %v664 = vadd.f32 %v485, %v663
        %665 = vmatmul.f32.gmra.mxu0 %v434
        %v666 = vpop.f32.mrf.mxu0
        %v667 = vadd.f32 %v485, %v666
        %668 = vmatmul.f32.gmra.mxu0 %v435
        %v669 = vpop.f32.mrf.mxu0
        %v670 = vadd.f32 %v485, %v669
        %671 = vmatmul.f32.gmra.mxu0 %v436
        %v672 = vpop.f32.mrf.mxu0
        %v673 = vadd.f32 %v485, %v672
        %674 = vmatmul.f32.gmra.mxu0 %v437
        %v675 = vpop.f32.mrf.mxu0
        %v676 = vadd.f32 %v485, %v675
        %677 = vmatmul.f32.gmra.mxu0 %v438
        %v678 = vpop.f32.mrf.mxu0
        %v679 = vadd.f32 %v485, %v678
        %680 = vmatmul.f32.gmra.mxu0 %v439
        %v681 = vpop.f32.mrf.mxu0
        %v682 = vadd.f32 %v485, %v681
        %683 = vmatmul.f32.gmra.mxu0 %v440
        %v684 = vpop.f32.mrf.mxu0
        %v685 = vadd.f32 %v485, %v684
        %686 = vmatmul.f32.gmra.mxu0 %v441
        %v687 = vpop.f32.mrf.mxu0
        %v688 = vadd.f32 %v485, %v687
        %689 = vmatmul.f32.gmra.mxu0 %v442
        %v690 = vpop.f32.mrf.mxu0
        %v691 = vadd.f32 %v485, %v690
        %692 = vmatmul.f32.gmra.mxu0 %v443
        %v693 = vpop.f32.mrf.mxu0
        %v694 = vadd.f32 %v485, %v693
        %695 = vmatmul.f32.gmra.mxu0 %v444
        %v696 = vpop.f32.mrf.mxu0
        %v697 = vadd.f32 %v485, %v696
        %698 = vmatmul.f32.gmra.mxu0 %v445
        %v699 = vpop.f32.mrf.mxu0
        %v700 = vadd.f32 %v485, %v699
        %701 = vmatmul.f32.gmra.mxu0 %v446
        %v702 = vpop.f32.mrf.mxu0
        %v703 = vadd.f32 %v485, %v702
        %704 = vmatmul.f32.gmra.mxu0 %v447
        %v705 = vpop.f32.mrf.mxu0
        %v706 = vadd.f32 %v485, %v705
        %707 = vmatmul.f32.gmra.mxu0 %v448
        %v708 = vpop.f32.mrf.mxu0
        %v709 = vadd.f32 %v485, %v708
        %710 = vmatmul.f32.gmra.mxu0 %v449
        %v711 = vpop.f32.mrf.mxu0
        %v712 = vadd.f32 %v485, %v711
        %713 = vdwg.mxu0
        %v714 = vmul.f32 %v506, %v506
        %v715 = vmul.f32 %v619, %v619
        %v716 = vmul.f32 %v509, %v509
        %v717 = vmul.f32 %v622, %v622
        %v718 = vmul.f32 %v512, %v512
        %v719 = vmul.f32 %v625, %v625
        %v720 = vmul.f32 %v515, %v515
        %v721 = vmul.f32 %v628, %v628
        %v722 = vmul.f32 %v518, %v518
        %v723 = vmul.f32 %v631, %v631
        %v724 = vmul.f32 %v521, %v521
        %v725 = vmul.f32 %v634, %v634
        %v726 = vmul.f32 %v524, %v524
        %v727 = vmul.f32 %v637, %v637
        %v728 = vmul.f32 %v527, %v527
        %v729 = vmul.f32 %v640, %v640
        %v730 = vmul.f32 %v530, %v530
        %v731 = vmul.f32 %v643, %v643
        %v732 = vmul.f32 %v533, %v533
        %v733 = vmul.f32 %v646, %v646
        %v734 = vmul.f32 %v536, %v536
        %v735 = vmul.f32 %v649, %v649
        %v736 = vmul.f32 %v539, %v539
        %v737 = vmul.f32 %v652, %v652
        %v738 = vmul.f32 %v542, %v542
        %v739 = vmul.f32 %v655, %v655
        %v740 = vmul.f32 %v545, %v545
        %v741 = vmul.f32 %v658, %v658
        %v742 = vmul.f32 %v548, %v548
        %v743 = vmul.f32 %v661, %v661
        %v744 = vmul.f32 %v551, %v551
        %v745 = vmul.f32 %v664, %v664
        %v746 = vmul.f32 %v554, %v554
        %v747 = vmul.f32 %v667, %v667
        %v748 = vmul.f32 %v557, %v557
        %v749 = vmul.f32 %v670, %v670
        %v750 = vmul.f32 %v560, %v560
        %v751 = vmul.f32 %v673, %v673
        %v752 = vmul.f32 %v563, %v563
        %v753 = vmul.f32 %v676, %v676
        %v754 = vmul.f32 %v566, %v566
        %v755 = vmul.f32 %v679, %v679
        %v756 = vmul.f32 %v569, %v569
        %v757 = vmul.f32 %v682, %v682
        %v758 = vmul.f32 %v572, %v572
        %v759 = vmul.f32 %v685, %v685
        %v760 = vmul.f32 %v575, %v575
        %v761 = vmul.f32 %v688, %v688
        %v762 = vmul.f32 %v578, %v578
        %v763 = vmul.f32 %v691, %v691
        %v764 = vmul.f32 %v581, %v581
        %v765 = vmul.f32 %v694, %v694
        %v766 = vmul.f32 %v584, %v584
        %v767 = vmul.f32 %v697, %v697
        %v768 = vmul.f32 %v587, %v587
        %v769 = vmul.f32 %v700, %v700
        %v770 = vmul.f32 %v590, %v590
        %v771 = vmul.f32 %v703, %v703
        %v772 = vmul.f32 %v593, %v593
        %v773 = vmul.f32 %v706, %v706
        %v774 = vmul.f32 %v596, %v596
        %v775 = vmul.f32 %v709, %v709
        %v776 = vmul.f32 %v599, %v599
        %v777 = vmul.f32 %v712, %v712
        %v778 = vmul.f32 %v506, %v714
        %v779 = vmul.f32 %v619, %v715
        %v780 = vmul.f32 %v509, %v716
        %v781 = vmul.f32 %v622, %v717
        %v782 = vmul.f32 %v512, %v718
        %v783 = vmul.f32 %v625, %v719
        %v784 = vmul.f32 %v515, %v720
        %v785 = vmul.f32 %v628, %v721
        %v786 = vmul.f32 %v518, %v722
        %v787 = vmul.f32 %v631, %v723
        %v788 = vmul.f32 %v521, %v724
        %v789 = vmul.f32 %v634, %v725
        %v790 = vmul.f32 %v524, %v726
        %v791 = vmul.f32 %v637, %v727
        %v792 = vmul.f32 %v527, %v728
        %v793 = vmul.f32 %v640, %v729
        %v794 = vmul.f32 %v530, %v730
        %v795 = vmul.f32 %v643, %v731
        %v796 = vmul.f32 %v533, %v732
        %v797 = vmul.f32 %v646, %v733
        %v798 = vmul.f32 %v536, %v734
        %v799 = vmul.f32 %v649, %v735
        %v800 = vmul.f32 %v539, %v736
        %v801 = vmul.f32 %v652, %v737
        %v802 = vmul.f32 %v542, %v738
        %v803 = vmul.f32 %v655, %v739
        %v804 = vmul.f32 %v545, %v740
        %v805 = vmul.f32 %v658, %v741
        %v806 = vmul.f32 %v548, %v742
        %v807 = vmul.f32 %v661, %v743
        %v808 = vmul.f32 %v551, %v744
        %v809 = vmul.f32 %v664, %v745
        %v810 = vmul.f32 %v554, %v746
        %v811 = vmul.f32 %v667, %v747
        %v812 = vmul.f32 %v557, %v748
        %v813 = vmul.f32 %v670, %v749
        %v814 = vmul.f32 %v560, %v750
        %v815 = vmul.f32 %v673, %v751
        %v816 = vmul.f32 %v563, %v752
        %v817 = vmul.f32 %v676, %v753
        %v818 = vmul.f32 %v566, %v754
        %v819 = vmul.f32 %v679, %v755
        %v820 = vmul.f32 %v569, %v756
        %v821 = vmul.f32 %v682, %v757
        %v822 = vmul.f32 %v572, %v758
        %v823 = vmul.f32 %v685, %v759
        %v824 = vmul.f32 %v575, %v760
        %v825 = vmul.f32 %v688, %v761
        %v826 = vmul.f32 %v578, %v762
        %v827 = vmul.f32 %v691, %v763
        %v828 = vmul.f32 %v581, %v764
        %v829 = vmul.f32 %v694, %v765
        %v830 = vmul.f32 %v584, %v766
        %v831 = vmul.f32 %v697, %v767
        %v832 = vmul.f32 %v587, %v768
        %v833 = vmul.f32 %v700, %v769
        %v834 = vmul.f32 %v590, %v770
        %v835 = vmul.f32 %v703, %v771
        %v836 = vmul.f32 %v593, %v772
        %v837 = vmul.f32 %v706, %v773
        %v838 = vmul.f32 %v596, %v774
        %v839 = vmul.f32 %v709, %v775
        %v840 = vmul.f32 %v599, %v776
        %v841 = vmul.f32 %v712, %v777
        %v842 = vmul.f32 %v778, 0.044715
        %v843 = vmul.f32 %v779, 0.044715
        %v844 = vmul.f32 %v780, 0.044715
        %v845 = vmul.f32 %v781, 0.044715
        %v846 = vmul.f32 %v782, 0.044715
        %v847 = vmul.f32 %v783, 0.044715
        %v848 = vmul.f32 %v784, 0.044715
        %v849 = vmul.f32 %v785, 0.044715
        %v850 = vmul.f32 %v786, 0.044715
        %v851 = vmul.f32 %v787, 0.044715
        %v852 = vmul.f32 %v788, 0.044715
        %v853 = vmul.f32 %v789, 0.044715
        %v854 = vmul.f32 %v790, 0.044715
        %v855 = vmul.f32 %v791, 0.044715
        %v856 = vmul.f32 %v792, 0.044715
        %v857 = vmul.f32 %v793, 0.044715
        %v858 = vmul.f32 %v794, 0.044715
        %v859 = vmul.f32 %v795, 0.044715
        %v860 = vmul.f32 %v796, 0.044715
        %v861 = vmul.f32 %v797, 0.044715
        %v862 = vmul.f32 %v798, 0.044715
        %v863 = vmul.f32 %v799, 0.044715
        %v864 = vmul.f32 %v800, 0.044715
        %v865 = vmul.f32 %v801, 0.044715
        %v866 = vmul.f32 %v802, 0.044715
        %v867 = vmul.f32 %v803, 0.044715
        %v868 = vmul.f32 %v804, 0.044715
        %v869 = vmul.f32 %v805, 0.044715
        %v870 = vmul.f32 %v806, 0.044715
        %v871 = vmul.f32 %v807, 0.044715
        %v872 = vmul.f32 %v808, 0.044715
        %v873 = vmul.f32 %v809, 0.044715
        %v874 = vmul.f32 %v810, 0.044715
        %v875 = vmul.f32 %v811, 0.044715
        %v876 = vmul.f32 %v812, 0.044715
        %v877 = vmul.f32 %v813, 0.044715
        %v878 = vmul.f32 %v814, 0.044715
        %v879 = vmul.f32 %v815, 0.044715
        %v880 = vmul.f32 %v816, 0.044715
        %v881 = vmul.f32 %v817, 0.044715
        %v882 = vmul.f32 %v818, 0.044715
        %v883 = vmul.f32 %v819, 0.044715
        %v884 = vmul.f32 %v820, 0.044715
        %v885 = vmul.f32 %v821, 0.044715
        %v886 = vmul.f32 %v822, 0.044715
        %v887 = vmul.f32 %v823, 0.044715
        %v888 = vmul.f32 %v824, 0.044715
        %v889 = vmul.f32 %v825, 0.044715
        %v890 = vmul.f32 %v826, 0.044715
        %v891 = vmul.f32 %v827, 0.044715
        %v892 = vmul.f32 %v828, 0.044715
        %v893 = vmul.f32 %v829, 0.044715
        %v894 = vmul.f32 %v830, 0.044715
        %v895 = vmul.f32 %v831, 0.044715
        %v896 = vmul.f32 %v832, 0.044715
        %v897 = vmul.f32 %v833, 0.044715
        %v898 = vmul.f32 %v834, 0.044715
        %v899 = vmul.f32 %v835, 0.044715
        %v900 = vmul.f32 %v836, 0.044715
        %v901 = vmul.f32 %v837, 0.044715
        %v902 = vmul.f32 %v838, 0.044715
        %v903 = vmul.f32 %v839, 0.044715
        %v904 = vmul.f32 %v840, 0.044715
        %v905 = vmul.f32 %v841, 0.044715
        %v906 = vadd.f32 %v506, %v842
        %v907 = vadd.f32 %v619, %v843
        %v908 = vadd.f32 %v509, %v844
        %v909 = vadd.f32 %v622, %v845
        %v910 = vadd.f32 %v512, %v846
        %v911 = vadd.f32 %v625, %v847
        %v912 = vadd.f32 %v515, %v848
        %v913 = vadd.f32 %v628, %v849
        %v914 = vadd.f32 %v518, %v850
        %v915 = vadd.f32 %v631, %v851
        %v916 = vadd.f32 %v521, %v852
        %v917 = vadd.f32 %v634, %v853
        %v918 = vadd.f32 %v524, %v854
        %v919 = vadd.f32 %v637, %v855
        %v920 = vadd.f32 %v527, %v856
        %v921 = vadd.f32 %v640, %v857
        %v922 = vadd.f32 %v530, %v858
        %v923 = vadd.f32 %v643, %v859
        %v924 = vadd.f32 %v533, %v860
        %v925 = vadd.f32 %v646, %v861
        %v926 = vadd.f32 %v536, %v862
        %v927 = vadd.f32 %v649, %v863
        %v928 = vadd.f32 %v539, %v864
        %v929 = vadd.f32 %v652, %v865
        %v930 = vadd.f32 %v542, %v866
        %v931 = vadd.f32 %v655, %v867
        %v932 = vadd.f32 %v545, %v868
        %v933 = vadd.f32 %v658, %v869
        %v934 = vadd.f32 %v548, %v870
        %v935 = vadd.f32 %v661, %v871
        %v936 = vadd.f32 %v551, %v872
        %v937 = vadd.f32 %v664, %v873
        %v938 = vadd.f32 %v554, %v874
        %v939 = vadd.f32 %v667, %v875
        %v940 = vadd.f32 %v557, %v876
        %v941 = vadd.f32 %v670, %v877
        %v942 = vadd.f32 %v560, %v878
        %v943 = vadd.f32 %v673, %v879
        %v944 = vadd.f32 %v563, %v880
        %v945 = vadd.f32 %v676, %v881
        %v946 = vadd.f32 %v566, %v882
        %v947 = vadd.f32 %v679, %v883
        %v948 = vadd.f32 %v569, %v884
        %v949 = vadd.f32 %v682, %v885
        %v950 = vadd.f32 %v572, %v886
        %v951 = vadd.f32 %v685, %v887
        %v952 = vadd.f32 %v575, %v888
        %v953 = vadd.f32 %v688, %v889
        %v954 = vadd.f32 %v578, %v890
        %v955 = vadd.f32 %v691, %v891
        %v956 = vadd.f32 %v581, %v892
        %v957 = vadd.f32 %v694, %v893
        %v958 = vadd.f32 %v584, %v894
        %v959 = vadd.f32 %v697, %v895
        %v960 = vadd.f32 %v587, %v896
        %v961 = vadd.f32 %v700, %v897
        %v962 = vadd.f32 %v590, %v898
        %v963 = vadd.f32 %v703, %v899
        %v964 = vadd.f32 %v593, %v900
        %v965 = vadd.f32 %v706, %v901
        %v966 = vadd.f32 %v596, %v902
        %v967 = vadd.f32 %v709, %v903
        %v968 = vadd.f32 %v599, %v904
        %v969 = vadd.f32 %v712, %v905
        %v970 = vmul.f32 %v906, 0.7978846
        %v971 = vmul.f32 %v907, 0.7978846
        %v972 = vmul.f32 %v908, 0.7978846
        %v973 = vmul.f32 %v909, 0.7978846
        %v974 = vmul.f32 %v910, 0.7978846
        %v975 = vmul.f32 %v911, 0.7978846
        %v976 = vmul.f32 %v912, 0.7978846
        %v977 = vmul.f32 %v913, 0.7978846
        %v978 = vmul.f32 %v914, 0.7978846
        %v979 = vmul.f32 %v915, 0.7978846
        %v980 = vmul.f32 %v916, 0.7978846
        %v981 = vmul.f32 %v917, 0.7978846
        %v982 = vmul.f32 %v918, 0.7978846
        %v983 = vmul.f32 %v919, 0.7978846
        %v984 = vmul.f32 %v920, 0.7978846
        %v985 = vmul.f32 %v921, 0.7978846
        %v986 = vmul.f32 %v922, 0.7978846
        %v987 = vmul.f32 %v923, 0.7978846
        %v988 = vmul.f32 %v924, 0.7978846
        %v989 = vmul.f32 %v925, 0.7978846
        %v990 = vmul.f32 %v926, 0.7978846
        %v991 = vmul.f32 %v927, 0.7978846
        %v992 = vmul.f32 %v928, 0.7978846
        %v993 = vmul.f32 %v929, 0.7978846
        %v994 = vmul.f32 %v930, 0.7978846
        %v995 = vmul.f32 %v931, 0.7978846
        %v996 = vmul.f32 %v932, 0.7978846
        %v997 = vmul.f32 %v933, 0.7978846
        %v998 = vmul.f32 %v934, 0.7978846
        %v999 = vmul.f32 %v935, 0.7978846
        %v1000 = vmul.f32 %v936, 0.7978846
        %v1001 = vmul.f32 %v937, 0.7978846
        %v1002 = vmul.f32 %v938, 0.7978846
        %v1003 = vmul.f32 %v939, 0.7978846
        %v1004 = vmul.f32 %v940, 0.7978846
        %v1005 = vmul.f32 %v941, 0.7978846
        %v1006 = vmul.f32 %v942, 0.7978846
        %v1007 = vmul.f32 %v943, 0.7978846
        %v1008 = vmul.f32 %v944, 0.7978846
        %v1009 = vmul.f32 %v945, 0.7978846
        %v1010 = vmul.f32 %v946, 0.7978846
        %v1011 = vmul.f32 %v947, 0.7978846
        %v1012 = vmul.f32 %v948, 0.7978846
        %v1013 = vmul.f32 %v949, 0.7978846
        %v1014 = vmul.f32 %v950, 0.7978846
        %v1015 = vmul.f32 %v951, 0.7978846
        %v1016 = vmul.f32 %v952, 0.7978846
        %v1017 = vmul.f32 %v953, 0.7978846
        %v1018 = vmul.f32 %v954, 0.7978846
        %v1019 = vmul.f32 %v955, 0.7978846
        %v1020 = vmul.f32 %v956, 0.7978846
        %v1021 = vmul.f32 %v957, 0.7978846
        %v1022 = vmul.f32 %v958, 0.7978846
        %v1023 = vmul.f32 %v959, 0.7978846
        %v1024 = vmul.f32 %v960, 0.7978846
        %v1025 = vmul.f32 %v961, 0.7978846
        %v1026 = vmul.f32 %v962, 0.7978846
        %v1027 = vmul.f32 %v963, 0.7978846
        %v1028 = vmul.f32 %v964, 0.7978846
        %v1029 = vmul.f32 %v965, 0.7978846
        %v1030 = vmul.f32 %v966, 0.7978846
        %v1031 = vmul.f32 %v967, 0.7978846
        %v1032 = vmul.f32 %v968, 0.7978846
        %v1033 = vmul.f32 %v969, 0.7978846
        %v1034 = vtanh.pop %v970
        %v1035 = vtanh.pop %v971
        %v1036 = vtanh.pop %v972
        %v1037 = vtanh.pop %v973
        %v1038 = vtanh.pop %v974
        %v1039 = vtanh.pop %v975
        %v1040 = vtanh.pop %v976
        %v1041 = vtanh.pop %v977
        %v1042 = vtanh.pop %v978
        %v1043 = vtanh.pop %v979
        %v1044 = vtanh.pop %v980
        %v1045 = vtanh.pop %v981
        %v1046 = vtanh.pop %v982
        %v1047 = vtanh.pop %v983
        %v1048 = vtanh.pop %v984
        %v1049 = vtanh.pop %v985
        %v1050 = vtanh.pop %v986
        %v1051 = vtanh.pop %v987
        %v1052 = vtanh.pop %v988
        %v1053 = vtanh.pop %v989
        %v1054 = vtanh.pop %v990
        %v1055 = vtanh.pop %v991
        %v1056 = vtanh.pop %v992
        %v1057 = vtanh.pop %v993
        %v1058 = vtanh.pop %v994
        %v1059 = vtanh.pop %v995
        %v1060 = vtanh.pop %v996
        %v1061 = vtanh.pop %v997
        %v1062 = vtanh.pop %v998
        %v1063 = vtanh.pop %v999
        %v1064 = vtanh.pop %v1000
        %v1065 = vtanh.pop %v1001
        %v1066 = vtanh.pop %v1002
        %v1067 = vtanh.pop %v1003
        %v1068 = vtanh.pop %v1004
        %v1069 = vtanh.pop %v1005
        %v1070 = vtanh.pop %v1006
        %v1071 = vtanh.pop %v1007
        %v1072 = vtanh.pop %v1008
        %v1073 = vtanh.pop %v1009
        %v1074 = vtanh.pop %v1010
        %v1075 = vtanh.pop %v1011
        %v1076 = vtanh.pop %v1012
        %v1077 = vtanh.pop %v1013
        %v1078 = vtanh.pop %v1014
        %v1079 = vtanh.pop %v1015
        %v1080 = vtanh.pop %v1016
        %v1081 = vtanh.pop %v1017
        %v1082 = vtanh.pop %v1018
        %v1083 = vtanh.pop %v1019
        %v1084 = vtanh.pop %v1020
        %v1085 = vtanh.pop %v1021
        %v1086 = vtanh.pop %v1022
        %v1087 = vtanh.pop %v1023
        %v1088 = vtanh.pop %v1024
        %v1089 = vtanh.pop %v1025
        %v1090 = vtanh.pop %v1026
        %v1091 = vtanh.pop %v1027
        %v1092 = vtanh.pop %v1028
        %v1093 = vtanh.pop %v1029
        %v1094 = vtanh.pop %v1030
        %v1095 = vtanh.pop %v1031
        %v1096 = vtanh.pop %v1032
        %v1097 = vtanh.pop %v1033
        %v1098 = vadd.f32 %v1034, 1.0
        %v1099 = vadd.f32 %v1035, 1.0
        %v1100 = vadd.f32 %v1036, 1.0
        %v1101 = vadd.f32 %v1037, 1.0
        %v1102 = vadd.f32 %v1038, 1.0
        %v1103 = vadd.f32 %v1039, 1.0
        %v1104 = vadd.f32 %v1040, 1.0
        %v1105 = vadd.f32 %v1041, 1.0
        %v1106 = vadd.f32 %v1042, 1.0
        %v1107 = vadd.f32 %v1043, 1.0
        %v1108 = vadd.f32 %v1044, 1.0
        %v1109 = vadd.f32 %v1045, 1.0
        %v1110 = vadd.f32 %v1046, 1.0
        %v1111 = vadd.f32 %v1047, 1.0
        %v1112 = vadd.f32 %v1048, 1.0
        %v1113 = vadd.f32 %v1049, 1.0
        %v1114 = vadd.f32 %v1050, 1.0
        %v1115 = vadd.f32 %v1051, 1.0
        %v1116 = vadd.f32 %v1052, 1.0
        %v1117 = vadd.f32 %v1053, 1.0
        %v1118 = vadd.f32 %v1054, 1.0
        %v1119 = vadd.f32 %v1055, 1.0
        %v1120 = vadd.f32 %v1056, 1.0
        %v1121 = vadd.f32 %v1057, 1.0
        %v1122 = vadd.f32 %v1058, 1.0
        %v1123 = vadd.f32 %v1059, 1.0
        %v1124 = vadd.f32 %v1060, 1.0
        %v1125 = vadd.f32 %v1061, 1.0
        %v1126 = vadd.f32 %v1062, 1.0
        %v1127 = vadd.f32 %v1063, 1.0
        %v1128 = vadd.f32 %v1064, 1.0
        %v1129 = vadd.f32 %v1065, 1.0
        %v1130 = vadd.f32 %v1066, 1.0
        %v1131 = vadd.f32 %v1067, 1.0
        %v1132 = vadd.f32 %v1068, 1.0
        %v1133 = vadd.f32 %v1069, 1.0
        %v1134 = vadd.f32 %v1070, 1.0
        %v1135 = vadd.f32 %v1071, 1.0
        %v1136 = vadd.f32 %v1072, 1.0
        %v1137 = vadd.f32 %v1073, 1.0
        %v1138 = vadd.f32 %v1074, 1.0
        %v1139 = vadd.f32 %v1075, 1.0
        %v1140 = vadd.f32 %v1076, 1.0
        %v1141 = vadd.f32 %v1077, 1.0
        %v1142 = vadd.f32 %v1078, 1.0
        %v1143 = vadd.f32 %v1079, 1.0
        %v1144 = vadd.f32 %v1080, 1.0
        %v1145 = vadd.f32 %v1081, 1.0
        %v1146 = vadd.f32 %v1082, 1.0
        %v1147 = vadd.f32 %v1083, 1.0
        %v1148 = vadd.f32 %v1084, 1.0
        %v1149 = vadd.f32 %v1085, 1.0
        %v1150 = vadd.f32 %v1086, 1.0
        %v1151 = vadd.f32 %v1087, 1.0
        %v1152 = vadd.f32 %v1088, 1.0
        %v1153 = vadd.f32 %v1089, 1.0
        %v1154 = vadd.f32 %v1090, 1.0
        %v1155 = vadd.f32 %v1091, 1.0
        %v1156 = vadd.f32 %v1092, 1.0
        %v1157 = vadd.f32 %v1093, 1.0
        %v1158 = vadd.f32 %v1094, 1.0
        %v1159 = vadd.f32 %v1095, 1.0
        %v1160 = vadd.f32 %v1096, 1.0
        %v1161 = vadd.f32 %v1097, 1.0
        %v1162 = vmul.f32 %v1098, 0.5
        %v1163 = vmul.f32 %v1099, 0.5
        %v1164 = vmul.f32 %v1100, 0.5
        %v1165 = vmul.f32 %v1101, 0.5
        %v1166 = vmul.f32 %v1102, 0.5
        %v1167 = vmul.f32 %v1103, 0.5
        %v1168 = vmul.f32 %v1104, 0.5
        %v1169 = vmul.f32 %v1105, 0.5
        %v1170 = vmul.f32 %v1106, 0.5
        %v1171 = vmul.f32 %v1107, 0.5
        %v1172 = vmul.f32 %v1108, 0.5
        %v1173 = vmul.f32 %v1109, 0.5
        %v1174 = vmul.f32 %v1110, 0.5
        %v1175 = vmul.f32 %v1111, 0.5
        %v1176 = vmul.f32 %v1112, 0.5
        %v1177 = vmul.f32 %v1113, 0.5
        %v1178 = vmul.f32 %v1114, 0.5
        %v1179 = vmul.f32 %v1115, 0.5
        %v1180 = vmul.f32 %v1116, 0.5
        %v1181 = vmul.f32 %v1117, 0.5
        %v1182 = vmul.f32 %v1118, 0.5
        %v1183 = vmul.f32 %v1119, 0.5
        %v1184 = vmul.f32 %v1120, 0.5
        %v1185 = vmul.f32 %v1121, 0.5
        %v1186 = vmul.f32 %v1122, 0.5
        %v1187 = vmul.f32 %v1123, 0.5
        %v1188 = vmul.f32 %v1124, 0.5
        %v1189 = vmul.f32 %v1125, 0.5
        %v1190 = vmul.f32 %v1126, 0.5
        %v1191 = vmul.f32 %v1127, 0.5
        %v1192 = vmul.f32 %v1128, 0.5
        %v1193 = vmul.f32 %v1129, 0.5
        %v1194 = vmul.f32 %v1130, 0.5
        %v1195 = vmul.f32 %v1131, 0.5
        %v1196 = vmul.f32 %v1132, 0.5
        %v1197 = vmul.f32 %v1133, 0.5
        %v1198 = vmul.f32 %v1134, 0.5
        %v1199 = vmul.f32 %v1135, 0.5
        %v1200 = vmul.f32 %v1136, 0.5
        %v1201 = vmul.f32 %v1137, 0.5
        %v1202 = vmul.f32 %v1138, 0.5
        %v1203 = vmul.f32 %v1139, 0.5
        %v1204 = vmul.f32 %v1140, 0.5
        %v1205 = vmul.f32 %v1141, 0.5
        %v1206 = vmul.f32 %v1142, 0.5
        %v1207 = vmul.f32 %v1143, 0.5
        %v1208 = vmul.f32 %v1144, 0.5
        %v1209 = vmul.f32 %v1145, 0.5
        %v1210 = vmul.f32 %v1146, 0.5
        %v1211 = vmul.f32 %v1147, 0.5
        %v1212 = vmul.f32 %v1148, 0.5
        %v1213 = vmul.f32 %v1149, 0.5
        %v1214 = vmul.f32 %v1150, 0.5
        %v1215 = vmul.f32 %v1151, 0.5
        %v1216 = vmul.f32 %v1152, 0.5
        %v1217 = vmul.f32 %v1153, 0.5
        %v1218 = vmul.f32 %v1154, 0.5
        %v1219 = vmul.f32 %v1155, 0.5
        %v1220 = vmul.f32 %v1156, 0.5
        %v1221 = vmul.f32 %v1157, 0.5
        %v1222 = vmul.f32 %v1158, 0.5
        %v1223 = vmul.f32 %v1159, 0.5
        %v1224 = vmul.f32 %v1160, 0.5
        %v1225 = vmul.f32 %v1161, 0.5
        %v1226 = vmul.f32 %v506, %v1162
        %v1227 = vmul.f32 %v619, %v1163
        %v1228 = vmul.f32 %v509, %v1164
        %v1229 = vmul.f32 %v622, %v1165
        %v1230 = vmul.f32 %v512, %v1166
        %v1231 = vmul.f32 %v625, %v1167
        %v1232 = vmul.f32 %v515, %v1168
        %v1233 = vmul.f32 %v628, %v1169
        %v1234 = vmul.f32 %v518, %v1170
        %v1235 = vmul.f32 %v631, %v1171
        %v1236 = vmul.f32 %v521, %v1172
        %v1237 = vmul.f32 %v634, %v1173
        %v1238 = vmul.f32 %v524, %v1174
        %v1239 = vmul.f32 %v637, %v1175
        %v1240 = vmul.f32 %v527, %v1176
        %v1241 = vmul.f32 %v640, %v1177
        %v1242 = vmul.f32 %v530, %v1178
        %v1243 = vmul.f32 %v643, %v1179
        %v1244 = vmul.f32 %v533, %v1180
        %v1245 = vmul.f32 %v646, %v1181
        %v1246 = vmul.f32 %v536, %v1182
        %v1247 = vmul.f32 %v649, %v1183
        %v1248 = vmul.f32 %v539, %v1184
        %v1249 = vmul.f32 %v652, %v1185
        %v1250 = vmul.f32 %v542, %v1186
        %v1251 = vmul.f32 %v655, %v1187
        %v1252 = vmul.f32 %v545, %v1188
        %v1253 = vmul.f32 %v658, %v1189
        %v1254 = vmul.f32 %v548, %v1190
        %v1255 = vmul.f32 %v661, %v1191
        %v1256 = vmul.f32 %v551, %v1192
        %v1257 = vmul.f32 %v664, %v1193
        %v1258 = vmul.f32 %v554, %v1194
        %v1259 = vmul.f32 %v667, %v1195
        %v1260 = vmul.f32 %v557, %v1196
        %v1261 = vmul.f32 %v670, %v1197
        %v1262 = vmul.f32 %v560, %v1198
        %v1263 = vmul.f32 %v673, %v1199
        %v1264 = vmul.f32 %v563, %v1200
        %v1265 = vmul.f32 %v676, %v1201
        %v1266 = vmul.f32 %v566, %v1202
        %v1267 = vmul.f32 %v679, %v1203
        %v1268 = vmul.f32 %v569, %v1204
        %v1269 = vmul.f32 %v682, %v1205
        %v1270 = vmul.f32 %v572, %v1206
        %v1271 = vmul.f32 %v685, %v1207
        %v1272 = vmul.f32 %v575, %v1208
        %v1273 = vmul.f32 %v688, %v1209
        %v1274 = vmul.f32 %v578, %v1210
        %v1275 = vmul.f32 %v691, %v1211
        %v1276 = vmul.f32 %v581, %v1212
        %v1277 = vmul.f32 %v694, %v1213
        %v1278 = vmul.f32 %v584, %v1214
        %v1279 = vmul.f32 %v697, %v1215
        %v1280 = vmul.f32 %v587, %v1216
        %v1281 = vmul.f32 %v700, %v1217
        %v1282 = vmul.f32 %v590, %v1218
        %v1283 = vmul.f32 %v703, %v1219
        %v1284 = vmul.f32 %v593, %v1220
        %v1285 = vmul.f32 %v706, %v1221
        %v1286 = vmul.f32 %v596, %v1222
        %v1287 = vmul.f32 %v709, %v1223
        %v1288 = vmul.f32 %v599, %v1224
        %v1289 = vmul.f32 %v712, %v1225
        %v1290 = vld [vmem:[#allocation2] sm:$0xff]
        %v1291 = vld [vmem:[#allocation2 + $0x8] sm:$0xff]
        %v1292 = vld [vmem:[#allocation2 + $0x10] sm:$0xff]
        %v1293 = vld [vmem:[#allocation2 + $0x18] sm:$0xff]
        %v1294 = vld [vmem:[#allocation2 + $0x20] sm:$0xff]
        %v1295 = vld [vmem:[#allocation2 + $0x28] sm:$0xff]
        %v1296 = vld [vmem:[#allocation2 + $0x30] sm:$0xff]
        %v1297 = vld [vmem:[#allocation2 + $0x38] sm:$0xff]
        %v1298 = vld [vmem:[#allocation2 + $0x40] sm:$0xff]
        %v1299 = vld [vmem:[#allocation2 + $0x48] sm:$0xff]
        %v1300 = vld [vmem:[#allocation2 + $0x50] sm:$0xff]
        %v1301 = vld [vmem:[#allocation2 + $0x58] sm:$0xff]
        %v1302 = vld [vmem:[#allocation2 + $0x60] sm:$0xff]
        %v1303 = vld [vmem:[#allocation2 + $0x68] sm:$0xff]
        %v1304 = vld [vmem:[#allocation2 + $0x70] sm:$0xff]
        %v1305 = vld [vmem:[#allocation2 + $0x78] sm:$0xff]
        %v1306 = vld [vmem:[#allocation2 + $0x80] sm:$0xff]
        %v1307 = vld [vmem:[#allocation2 + $0x88] sm:$0xff]
        %v1308 = vld [vmem:[#allocation2 + $0x90] sm:$0xff]
        %v1309 = vld [vmem:[#allocation2 + $0x98] sm:$0xff]
        %v1310 = vld [vmem:[#allocation2 + $0xa0] sm:$0xff]
        %v1311 = vld [vmem:[#allocation2 + $0xa8] sm:$0xff]
        %v1312 = vld [vmem:[#allocation2 + $0xb0] sm:$0xff]
        %v1313 = vld [vmem:[#allocation2 + $0xb8] sm:$0xff]
        %v1314 = vld [vmem:[#allocation2 + $0xc0] sm:$0xff]
        %v1315 = vld [vmem:[#allocation2 + $0xc8] sm:$0xff]
        %v1316 = vld [vmem:[#allocation2 + $0xd0] sm:$0xff]
        %v1317 = vld [vmem:[#allocation2 + $0xd8] sm:$0xff]
        %v1318 = vld [vmem:[#allocation2 + $0xe0] sm:$0xff]
        %v1319 = vld [vmem:[#allocation2 + $0xe8] sm:$0xff]
        %v1320 = vld [vmem:[#allocation2 + $0xf0] sm:$0xff]
        %v1321 = vld [vmem:[#allocation2 + $0xf8] sm:$0xff]
        %v1322 = vld [vmem:[%s334] sm:$0xff]
        %v1323 = vld [vmem:[%s334 + $0x8] sm:$0xff]
        %v1324 = vld [vmem:[%s334 + $0x10] sm:$0xff]
        %v1325 = vld [vmem:[%s334 + $0x18] sm:$0xff]
        %v1326 = vld [vmem:[%s334 + $0x20] sm:$0xff]
        %v1327 = vld [vmem:[%s334 + $0x28] sm:$0xff]
        %v1328 = vld [vmem:[%s334 + $0x30] sm:$0xff]
        %v1329 = vld [vmem:[%s334 + $0x38] sm:$0xff]
        %v1330 = vld [vmem:[%s334 + $0x40] sm:$0xff]
        %v1331 = vld [vmem:[%s334 + $0x48] sm:$0xff]
        %v1332 = vld [vmem:[%s334 + $0x50] sm:$0xff]
        %v1333 = vld [vmem:[%s334 + $0x58] sm:$0xff]
        %v1334 = vld [vmem:[%s334 + $0x60] sm:$0xff]
        %v1335 = vld [vmem:[%s334 + $0x68] sm:$0xff]
        %v1336 = vld [vmem:[%s334 + $0x70] sm:$0xff]
        %v1337 = vld [vmem:[%s334 + $0x78] sm:$0xff]
        %v1338 = vld [vmem:[%s334 + $0x80] sm:$0xff]
        %v1339 = vld [vmem:[%s334 + $0x88] sm:$0xff]
        %v1340 = vld [vmem:[%s334 + $0x90] sm:$0xff]
        %v1341 = vld [vmem:[%s334 + $0x98] sm:$0xff]
        %v1342 = vld [vmem:[%s334 + $0xa0] sm:$0xff]
        %v1343 = vld [vmem:[%s334 + $0xa8] sm:$0xff]
        %v1344 = vld [vmem:[%s334 + $0xb0] sm:$0xff]
        %v1345 = vld [vmem:[%s334 + $0xb8] sm:$0xff]
        %v1346 = vld [vmem:[%s334 + $0xc0] sm:$0xff]
        %v1347 = vld [vmem:[%s334 + $0xc8] sm:$0xff]
        %v1348 = vld [vmem:[%s334 + $0xd0] sm:$0xff]
        %v1349 = vld [vmem:[%s334 + $0xd8] sm:$0xff]
        %v1350 = vld [vmem:[%s334 + $0xe0] sm:$0xff]
        %v1351 = vld [vmem:[%s334 + $0xe8] sm:$0xff]
        %v1352 = vld [vmem:[%s334 + $0xf0] sm:$0xff]
        %v1353 = vld [vmem:[%s334 + $0xf8] sm:$0xff]
        %1354 = vmatpush.msra.mxu0 %v1337
        %1355 = vmatpush.msra.mxu0 %v1336
        %1356 = vmatpush.msra.mxu0 %v1335
        %1357 = vmatpush.msra.mxu0 %v1334
        %1358 = vmatpush.msra.mxu0 %v1333
        %1359 = vmatpush.msra.mxu0 %v1332
        %1360 = vmatpush.msra.mxu0 %v1331
        %1361 = vmatpush.msra.mxu0 %v1330
        %1362 = vmatpush.msra.mxu0 %v1329
        %1363 = vmatpush.msra.mxu0 %v1328
        %1364 = vmatpush.msra.mxu0 %v1327
        %1365 = vmatpush.msra.mxu0 %v1326
        %1366 = vmatpush.msra.mxu0 %v1325
        %1367 = vmatpush.msra.mxu0 %v1324
        %1368 = vmatpush.msra.mxu0 %v1323
        %1369 = vmatpush.msra.mxu0 %v1322
        %1370 = vmatmul.f32.gmra.mxu0 %v1226
        %v1371 = vpop.f32.mrf.mxu0
        %v1372 = vadd.f32 0.0, %v1371
        %1373 = vmatmul.f32.gmra.mxu0 %v1228
        %v1374 = vpop.f32.mrf.mxu0
        %v1375 = vadd.f32 0.0, %v1374
        %1376 = vmatmul.f32.gmra.mxu0 %v1230
        %v1377 = vpop.f32.mrf.mxu0
        %v1378 = vadd.f32 0.0, %v1377
        %1379 = vmatmul.f32.gmra.mxu0 %v1232
        %v1380 = vpop.f32.mrf.mxu0
        %v1381 = vadd.f32 0.0, %v1380
        %1382 = vmatmul.f32.gmra.mxu0 %v1234
        %v1383 = vpop.f32.mrf.mxu0
        %v1384 = vadd.f32 0.0, %v1383
        %1385 = vmatmul.f32.gmra.mxu0 %v1236
        %v1386 = vpop.f32.mrf.mxu0
        %v1387 = vadd.f32 0.0, %v1386
        %1388 = vmatmul.f32.gmra.mxu0 %v1238
        %v1389 = vpop.f32.mrf.mxu0
        %v1390 = vadd.f32 0.0, %v1389
        %1391 = vmatmul.f32.gmra.mxu0 %v1240
        %v1392 = vpop.f32.mrf.mxu0
        %v1393 = vadd.f32 0.0, %v1392
        %1394 = vmatmul.f32.gmra.mxu0 %v1242
        %v1395 = vpop.f32.mrf.mxu0
        %v1396 = vadd.f32 0.0, %v1395
        %1397 = vmatmul.f32.gmra.mxu0 %v1244
        %v1398 = vpop.f32.mrf.mxu0
        %v1399 = vadd.f32 0.0, %v1398
        %1400 = vmatmul.f32.gmra.mxu0 %v1246
        %v1401 = vpop.f32.mrf.mxu0
        %v1402 = vadd.f32 0.0, %v1401
        %1403 = vmatmul.f32.gmra.mxu0 %v1248
        %v1404 = vpop.f32.mrf.mxu0
        %v1405 = vadd.f32 0.0, %v1404
        %1406 = vmatmul.f32.gmra.mxu0 %v1250
        %v1407 = vpop.f32.mrf.mxu0
        %v1408 = vadd.f32 0.0, %v1407
        %1409 = vmatmul.f32.gmra.mxu0 %v1252
        %v1410 = vpop.f32.mrf.mxu0
        %v1411 = vadd.f32 0.0, %v1410
        %1412 = vmatmul.f32.gmra.mxu0 %v1254
        %v1413 = vpop.f32.mrf.mxu0
        %v1414 = vadd.f32 0.0, %v1413
        %1415 = vmatmul.f32.gmra.mxu0 %v1256
        %v1416 = vpop.f32.mrf.mxu0
        %v1417 = vadd.f32 0.0, %v1416
        %1418 = vmatmul.f32.gmra.mxu0 %v1258
        %v1419 = vpop.f32.mrf.mxu0
        %v1420 = vadd.f32 0.0, %v1419
        %1421 = vmatmul.f32.gmra.mxu0 %v1260
        %v1422 = vpop.f32.mrf.mxu0
        %v1423 = vadd.f32 0.0, %v1422
        %1424 = vmatmul.f32.gmra.mxu0 %v1262
        %v1425 = vpop.f32.mrf.mxu0
        %v1426 = vadd.f32 0.0, %v1425
        %1427 = vmatmul.f32.gmra.mxu0 %v1264
        %v1428 = vpop.f32.mrf.mxu0
        %v1429 = vadd.f32 0.0, %v1428
        %1430 = vmatmul.f32.gmra.mxu0 %v1266
        %v1431 = vpop.f32.mrf.mxu0
        %v1432 = vadd.f32 0.0, %v1431
        %1433 = vmatmul.f32.gmra.mxu0 %v1268
        %v1434 = vpop.f32.mrf.mxu0
        %v1435 = vadd.f32 0.0, %v1434
        %1436 = vmatmul.f32.gmra.mxu0 %v1270
        %v1437 = vpop.f32.mrf.mxu0
        %v1438 = vadd.f32 0.0, %v1437
        %1439 = vmatmul.f32.gmra.mxu0 %v1272
        %v1440 = vpop.f32.mrf.mxu0
        %v1441 = vadd.f32 0.0, %v1440
        %1442 = vmatmul.f32.gmra.mxu0 %v1274
        %v1443 = vpop.f32.mrf.mxu0
        %v1444 = vadd.f32 0.0, %v1443
        %1445 = vmatmul.f32.gmra.mxu0 %v1276
        %v1446 = vpop.f32.mrf.mxu0
        %v1447 = vadd.f32 0.0, %v1446
        %1448 = vmatmul.f32.gmra.mxu0 %v1278
        %v1449 = vpop.f32.mrf.mxu0
        %v1450 = vadd.f32 0.0, %v1449
        %1451 = vmatmul.f32.gmra.mxu0 %v1280
        %v1452 = vpop.f32.mrf.mxu0
        %v1453 = vadd.f32 0.0, %v1452
        %1454 = vmatmul.f32.gmra.mxu0 %v1282
        %v1455 = vpop.f32.mrf.mxu0
        %v1456 = vadd.f32 0.0, %v1455
        %1457 = vmatmul.f32.gmra.mxu0 %v1284
        %v1458 = vpop.f32.mrf.mxu0
        %v1459 = vadd.f32 0.0, %v1458
        %1460 = vmatmul.f32.gmra.mxu0 %v1286
        %v1461 = vpop.f32.mrf.mxu0
        %v1462 = vadd.f32 0.0, %v1461
        %1463 = vmatmul.f32.gmra.mxu0 %v1288
        %v1464 = vpop.f32.mrf.mxu0
        %v1465 = vadd.f32 0.0, %v1464
        %1466 = vdwg.mxu0
        %1467 = vmatpush.msra.mxu0 %v1353
        %1468 = vmatpush.msra.mxu0 %v1352
        %1469 = vmatpush.msra.mxu0 %v1351
        %1470 = vmatpush.msra.mxu0 %v1350
        %1471 = vmatpush.msra.mxu0 %v1349
        %1472 = vmatpush.msra.mxu0 %v1348
        %1473 = vmatpush.msra.mxu0 %v1347
        %1474 = vmatpush.msra.mxu0 %v1346
        %1475 = vmatpush.msra.mxu0 %v1345
        %1476 = vmatpush.msra.mxu0 %v1344
        %1477 = vmatpush.msra.mxu0 %v1343
        %1478 = vmatpush.msra.mxu0 %v1342
        %1479 = vmatpush.msra.mxu0 %v1341
        %1480 = vmatpush.msra.mxu0 %v1340
        %1481 = vmatpush.msra.mxu0 %v1339
        %1482 = vmatpush.msra.mxu0 %v1338
        %1483 = vmatmul.f32.gmra.mxu0 %v1227
        %v1484 = vpop.f32.mrf.mxu0
        %v1485 = vadd.f32 %v1372, %v1484
        %1486 = vmatmul.f32.gmra.mxu0 %v1229
        %v1487 = vpop.f32.mrf.mxu0
        %v1488 = vadd.f32 %v1375, %v1487
        %1489 = vmatmul.f32.gmra.mxu0 %v1231
        %v1490 = vpop.f32.mrf.mxu0
        %v1491 = vadd.f32 %v1378, %v1490
        %1492 = vmatmul.f32.gmra.mxu0 %v1233
        %v1493 = vpop.f32.mrf.mxu0
        %v1494 = vadd.f32 %v1381, %v1493
        %1495 = vmatmul.f32.gmra.mxu0 %v1235
        %v1496 = vpop.f32.mrf.mxu0
        %v1497 = vadd.f32 %v1384, %v1496
        %1498 = vmatmul.f32.gmra.mxu0 %v1237
        %v1499 = vpop.f32.mrf.mxu0
        %v1500 = vadd.f32 %v1387, %v1499
        %1501 = vmatmul.f32.gmra.mxu0 %v1239
        %v1502 = vpop.f32.mrf.mxu0
        %v1503 = vadd.f32 %v1390, %v1502
        %1504 = vmatmul.f32.gmra.mxu0 %v1241
        %v1505 = vpop.f32.mrf.mxu0
        %v1506 = vadd.f32 %v1393, %v1505
        %1507 = vmatmul.f32.gmra.mxu0 %v1243
        %v1508 = vpop.f32.mrf.mxu0
        %v1509 = vadd.f32 %v1396, %v1508
        %1510 = vmatmul.f32.gmra.mxu0 %v1245
        %v1511 = vpop.f32.mrf.mxu0
        %v1512 = vadd.f32 %v1399, %v1511
        %1513 = vmatmul.f32.gmra.mxu0 %v1247
        %v1514 = vpop.f32.mrf.mxu0
        %v1515 = vadd.f32 %v1402, %v1514
        %1516 = vmatmul.f32.gmra.mxu0 %v1249
        %v1517 = vpop.f32.mrf.mxu0
        %v1518 = vadd.f32 %v1405, %v1517
        %1519 = vmatmul.f32.gmra.mxu0 %v1251
        %v1520 = vpop.f32.mrf.mxu0
        %v1521 = vadd.f32 %v1408, %v1520
        %1522 = vmatmul.f32.gmra.mxu0 %v1253
        %v1523 = vpop.f32.mrf.mxu0
        %v1524 = vadd.f32 %v1411, %v1523
        %1525 = vmatmul.f32.gmra.mxu0 %v1255
        %v1526 = vpop.f32.mrf.mxu0
        %v1527 = vadd.f32 %v1414, %v1526
        %1528 = vmatmul.f32.gmra.mxu0 %v1257
        %v1529 = vpop.f32.mrf.mxu0
        %v1530 = vadd.f32 %v1417, %v1529
        %1531 = vmatmul.f32.gmra.mxu0 %v1259
        %v1532 = vpop.f32.mrf.mxu0
        %v1533 = vadd.f32 %v1420, %v1532
        %1534 = vmatmul.f32.gmra.mxu0 %v1261
        %v1535 = vpop.f32.mrf.mxu0
        %v1536 = vadd.f32 %v1423, %v1535
        %1537 = vmatmul.f32.gmra.mxu0 %v1263
        %v1538 = vpop.f32.mrf.mxu0
        %v1539 = vadd.f32 %v1426, %v1538
        %1540 = vmatmul.f32.gmra.mxu0 %v1265
        %v1541 = vpop.f32.mrf.mxu0
        %v1542 = vadd.f32 %v1429, %v1541
        %1543 = vmatmul.f32.gmra.mxu0 %v1267
        %v1544 = vpop.f32.mrf.mxu0
        %v1545 = vadd.f32 %v1432, %v1544
        %1546 = vmatmul.f32.gmra.mxu0 %v1269
        %v1547 = vpop.f32.mrf.mxu0
        %v1548 = vadd.f32 %v1435, %v1547
        %1549 = vmatmul.f32.gmra.mxu0 %v1271
        %v1550 = vpop.f32.mrf.mxu0
        %v1551 = vadd.f32 %v1438, %v1550
        %1552 = vmatmul.f32.gmra.mxu0 %v1273
        %v1553 = vpop.f32.mrf.mxu0
        %v1554 = vadd.f32 %v1441, %v1553
        %1555 = vmatmul.f32.gmra.mxu0 %v1275
        %v1556 = vpop.f32.mrf.mxu0
        %v1557 = vadd.f32 %v1444, %v1556
        %1558 = vmatmul.f32.gmra.mxu0 %v1277
        %v1559 = vpop.f32.mrf.mxu0
        %v1560 = vadd.f32 %v1447, %v1559
        %1561 = vmatmul.f32.gmra.mxu0 %v1279
        %v1562 = vpop.f32.mrf.mxu0
        %v1563 = vadd.f32 %v1450, %v1562
        %1564 = vmatmul.f32.gmra.mxu0 %v1281
        %v1565 = vpop.f32.mrf.mxu0
        %v1566 = vadd.f32 %v1453, %v1565
        %1567 = vmatmul.f32.gmra.mxu0 %v1283
        %v1568 = vpop.f32.mrf.mxu0
        %v1569 = vadd.f32 %v1456, %v1568
        %1570 = vmatmul.f32.gmra.mxu0 %v1285
        %v1571 = vpop.f32.mrf.mxu0
        %v1572 = vadd.f32 %v1459, %v1571
        %1573 = vmatmul.f32.gmra.mxu0 %v1287
        %v1574 = vpop.f32.mrf.mxu0
        %v1575 = vadd.f32 %v1462, %v1574
        %1576 = vmatmul.f32.gmra.mxu0 %v1289
        %v1577 = vpop.f32.mrf.mxu0
        %v1578 = vadd.f32 %v1465, %v1577
        %1579 = vdwg.mxu0
        %v1580 = vadd.f32 %v1290, %v1485
        %v1581 = vadd.f32 %v1291, %v1488
        %v1582 = vadd.f32 %v1292, %v1491
        %v1583 = vadd.f32 %v1293, %v1494
        %v1584 = vadd.f32 %v1294, %v1497
        %v1585 = vadd.f32 %v1295, %v1500
        %v1586 = vadd.f32 %v1296, %v1503
        %v1587 = vadd.f32 %v1297, %v1506
        %v1588 = vadd.f32 %v1298, %v1509
        %v1589 = vadd.f32 %v1299, %v1512
        %v1590 = vadd.f32 %v1300, %v1515
        %v1591 = vadd.f32 %v1301, %v1518
        %v1592 = vadd.f32 %v1302, %v1521
        %v1593 = vadd.f32 %v1303, %v1524
        %v1594 = vadd.f32 %v1304, %v1527
        %v1595 = vadd.f32 %v1305, %v1530
        %v1596 = vadd.f32 %v1306, %v1533
        %v1597 = vadd.f32 %v1307, %v1536
        %v1598 = vadd.f32 %v1308, %v1539
        %v1599 = vadd.f32 %v1309, %v1542
        %v1600 = vadd.f32 %v1310, %v1545
        %v1601 = vadd.f32 %v1311, %v1548
        %v1602 = vadd.f32 %v1312, %v1551
        %v1603 = vadd.f32 %v1313, %v1554
        %v1604 = vadd.f32 %v1314, %v1557
        %v1605 = vadd.f32 %v1315, %v1560
        %v1606 = vadd.f32 %v1316, %v1563
        %v1607 = vadd.f32 %v1317, %v1566
        %v1608 = vadd.f32 %v1318, %v1569
        %v1609 = vadd.f32 %v1319, %v1572
        %v1610 = vadd.f32 %v1320, %v1575
        %v1611 = vadd.f32 %v1321, %v1578
        %1612 = vst [vmem:[#allocation2] sm:$0xff] %v1580
        %1613 = vst [vmem:[#allocation2 + $0x8] sm:$0xff] %v1581
        %1614 = vst [vmem:[#allocation2 + $0x10] sm:$0xff] %v1582
        %1615 = vst [vmem:[#allocation2 + $0x18] sm:$0xff] %v1583
        %1616 = vst [vmem:[#allocation2 + $0x20] sm:$0xff] %v1584
        %1617 = vst [vmem:[#allocation2 + $0x28] sm:$0xff] %v1585
        %1618 = vst [vmem:[#allocation2 + $0x30] sm:$0xff] %v1586
        %1619 = vst [vmem:[#allocation2 + $0x38] sm:$0xff] %v1587
        %1620 = vst [vmem:[#allocation2 + $0x40] sm:$0xff] %v1588
        %1621 = vst [vmem:[#allocation2 + $0x48] sm:$0xff] %v1589
        %1622 = vst [vmem:[#allocation2 + $0x50] sm:$0xff] %v1590
        %1623 = vst [vmem:[#allocation2 + $0x58] sm:$0xff] %v1591
        %1624 = vst [vmem:[#allocation2 + $0x60] sm:$0xff] %v1592
        %1625 = vst [vmem:[#allocation2 + $0x68] sm:$0xff] %v1593
        %1626 = vst [vmem:[#allocation2 + $0x70] sm:$0xff] %v1594
        %1627 = vst [vmem:[#allocation2 + $0x78] sm:$0xff] %v1595
        %1628 = vst [vmem:[#allocation2 + $0x80] sm:$0xff] %v1596
        %1629 = vst [vmem:[#allocation2 + $0x88] sm:$0xff] %v1597
        %1630 = vst [vmem:[#allocation2 + $0x90] sm:$0xff] %v1598
        %1631 = vst [vmem:[#allocation2 + $0x98] sm:$0xff] %v1599
        %1632 = vst [vmem:[#allocation2 + $0xa0] sm:$0xff] %v1600
        %1633 = vst [vmem:[#allocation2 + $0xa8] sm:$0xff] %v1601
        %1634 = vst [vmem:[#allocation2 + $0xb0] sm:$0xff] %v1602
        %1635 = vst [vmem:[#allocation2 + $0xb8] sm:$0xff] %v1603
        %1636 = vst [vmem:[#allocation2 + $0xc0] sm:$0xff] %v1604
        %1637 = vst [vmem:[#allocation2 + $0xc8] sm:$0xff] %v1605
        %1638 = vst [vmem:[#allocation2 + $0xd0] sm:$0xff] %v1606
        %1639 = vst [vmem:[#allocation2 + $0xd8] sm:$0xff] %v1607
        %1640 = vst [vmem:[#allocation2 + $0xe0] sm:$0xff] %v1608
        %1641 = vst [vmem:[#allocation2 + $0xe8] sm:$0xff] %v1609
        %1642 = vst [vmem:[#allocation2 + $0xf0] sm:$0xff] %v1610
        %1643 = vst [vmem:[#allocation2 + $0xf8] sm:$0xff] %v1611
        %p1644 = scmp.eq.s32.totalorder %s33, 1
        // Predicated region
        $region61: #{tpu_custom_call.1} parent=39 // pred_check
          %p1645 = pneg %p1644
        $region62: #{tpu_custom_call.1} parent=39 // pred_check_branch
          %1647 = sbr.rel (%p1645) target = $region64
        $region63: #{tpu_custom_call.1} parent=39 // pred_region
          %v1648 = vld [vmem:[#allocation2] sm:$0xff]
          %v1649 = vld [vmem:[#allocation2 + $0x8] sm:$0xff]
          %v1650 = vld [vmem:[#allocation2 + $0x10] sm:$0xff]
          %v1651 = vld [vmem:[#allocation2 + $0x18] sm:$0xff]
          %v1652 = vld [vmem:[#allocation2 + $0x20] sm:$0xff]
          %v1653 = vld [vmem:[#allocation2 + $0x28] sm:$0xff]
          %v1654 = vld [vmem:[#allocation2 + $0x30] sm:$0xff]
          %v1655 = vld [vmem:[#allocation2 + $0x38] sm:$0xff]
          %v1656 = vld [vmem:[#allocation2 + $0x40] sm:$0xff]
          %v1657 = vld [vmem:[#allocation2 + $0x48] sm:$0xff]
          %v1658 = vld [vmem:[#allocation2 + $0x50] sm:$0xff]
          %v1659 = vld [vmem:[#allocation2 + $0x58] sm:$0xff]
          %v1660 = vld [vmem:[#allocation2 + $0x60] sm:$0xff]
          %v1661 = vld [vmem:[#allocation2 + $0x68] sm:$0xff]
          %v1662 = vld [vmem:[#allocation2 + $0x70] sm:$0xff]
          %v1663 = vld [vmem:[#allocation2 + $0x78] sm:$0xff]
          %v1664 = vld [vmem:[#allocation2 + $0x80] sm:$0xff]
          %v1665 = vld [vmem:[#allocation2 + $0x88] sm:$0xff]
          %v1666 = vld [vmem:[#allocation2 + $0x90] sm:$0xff]
          %v1667 = vld [vmem:[#allocation2 + $0x98] sm:$0xff]
          %v1668 = vld [vmem:[#allocation2 + $0xa0] sm:$0xff]
          %v1669 = vld [vmem:[#allocation2 + $0xa8] sm:$0xff]
          %v1670 = vld [vmem:[#allocation2 + $0xb0] sm:$0xff]
          %v1671 = vld [vmem:[#allocation2 + $0xb8] sm:$0xff]
          %v1672 = vld [vmem:[#allocation2 + $0xc0] sm:$0xff]
          %v1673 = vld [vmem:[#allocation2 + $0xc8] sm:$0xff]
          %v1674 = vld [vmem:[#allocation2 + $0xd0] sm:$0xff]
          %v1675 = vld [vmem:[#allocation2 + $0xd8] sm:$0xff]
          %v1676 = vld [vmem:[#allocation2 + $0xe0] sm:$0xff]
          %v1677 = vld [vmem:[#allocation2 + $0xe8] sm:$0xff]
          %v1678 = vld [vmem:[#allocation2 + $0xf0] sm:$0xff]
          %v1679 = vld [vmem:[#allocation2 + $0xf8] sm:$0xff]
          %v1680 = vld [vmem:[%s4] sm:$0x1]
          %v1682 = vperm.slane %v1680, 0
          %v1684 = vadd.f32 %v1648, %v1682
          %v1685 = vadd.f32 %v1649, %v1682
          %v1686 = vadd.f32 %v1650, %v1682
          %v1687 = vadd.f32 %v1651, %v1682
          %v1688 = vadd.f32 %v1652, %v1682
          %v1689 = vadd.f32 %v1653, %v1682
          %v1690 = vadd.f32 %v1654, %v1682
          %v1691 = vadd.f32 %v1655, %v1682
          %v1692 = vadd.f32 %v1656, %v1682
          %v1693 = vadd.f32 %v1657, %v1682
          %v1694 = vadd.f32 %v1658, %v1682
          %v1695 = vadd.f32 %v1659, %v1682
          %v1696 = vadd.f32 %v1660, %v1682
          %v1697 = vadd.f32 %v1661, %v1682
          %v1698 = vadd.f32 %v1662, %v1682
          %v1699 = vadd.f32 %v1663, %v1682
          %v1700 = vadd.f32 %v1664, %v1682
          %v1701 = vadd.f32 %v1665, %v1682
          %v1702 = vadd.f32 %v1666, %v1682
          %v1703 = vadd.f32 %v1667, %v1682
          %v1704 = vadd.f32 %v1668, %v1682
          %v1705 = vadd.f32 %v1669, %v1682
          %v1706 = vadd.f32 %v1670, %v1682
          %v1707 = vadd.f32 %v1671, %v1682
          %v1708 = vadd.f32 %v1672, %v1682
          %v1709 = vadd.f32 %v1673, %v1682
          %v1710 = vadd.f32 %v1674, %v1682
          %v1711 = vadd.f32 %v1675, %v1682
          %v1712 = vadd.f32 %v1676, %v1682
          %v1713 = vadd.f32 %v1677, %v1682
          %v1714 = vadd.f32 %v1678, %v1682
          %v1715 = vadd.f32 %v1679, %v1682
          %1716 = vst [vmem:[%s376] sm:$0xff] %v1684
          %1717 = vst [vmem:[%s376 + $0x8] sm:$0xff] %v1685
          %1718 = vst [vmem:[%s376 + $0x10] sm:$0xff] %v1686
          %1719 = vst [vmem:[%s376 + $0x18] sm:$0xff] %v1687
          %1720 = vst [vmem:[%s376 + $0x20] sm:$0xff] %v1688
          %1721 = vst [vmem:[%s376 + $0x28] sm:$0xff] %v1689
          %1722 = vst [vmem:[%s376 + $0x30] sm:$0xff] %v1690
          %1723 = vst [vmem:[%s376 + $0x38] sm:$0xff] %v1691
          %1724 = vst [vmem:[%s376 + $0x40] sm:$0xff] %v1692
          %1725 = vst [vmem:[%s376 + $0x48] sm:$0xff] %v1693
          %1726 = vst [vmem:[%s376 + $0x50] sm:$0xff] %v1694
          %1727 = vst [vmem:[%s376 + $0x58] sm:$0xff] %v1695
          %1728 = vst [vmem:[%s376 + $0x60] sm:$0xff] %v1696
          %1729 = vst [vmem:[%s376 + $0x68] sm:$0xff] %v1697
          %1730 = vst [vmem:[%s376 + $0x70] sm:$0xff] %v1698
          %1731 = vst [vmem:[%s376 + $0x78] sm:$0xff] %v1699
          %1732 = vst [vmem:[%s376 + $0x80] sm:$0xff] %v1700
          %1733 = vst [vmem:[%s376 + $0x88] sm:$0xff] %v1701
          %1734 = vst [vmem:[%s376 + $0x90] sm:$0xff] %v1702
          %1735 = vst [vmem:[%s376 + $0x98] sm:$0xff] %v1703
          %1736 = vst [vmem:[%s376 + $0xa0] sm:$0xff] %v1704
          %1737 = vst [vmem:[%s376 + $0xa8] sm:$0xff] %v1705
          %1738 = vst [vmem:[%s376 + $0xb0] sm:$0xff] %v1706
          %1739 = vst [vmem:[%s376 + $0xb8] sm:$0xff] %v1707
          %1740 = vst [vmem:[%s376 + $0xc0] sm:$0xff] %v1708
          %1741 = vst [vmem:[%s376 + $0xc8] sm:$0xff] %v1709
          %1742 = vst [vmem:[%s376 + $0xd0] sm:$0xff] %v1710
          %1743 = vst [vmem:[%s376 + $0xd8] sm:$0xff] %v1711
          %1744 = vst [vmem:[%s376 + $0xe0] sm:$0xff] %v1712
          %1745 = vst [vmem:[%s376 + $0xe8] sm:$0xff] %v1713
          %1746 = vst [vmem:[%s376 + $0xf0] sm:$0xff] %v1714
          %1747 = vst [vmem:[%s376 + $0xf8] sm:$0xff] %v1715
        $region64: #{tpu_custom_call.1} parent=39 // pred_fallthru
          _
        %s1748 = sand.u32 %s173, 1
        %s1749 = scalar_lea.sflag [#allocation5], %s1748
        %s1750 = sand.u32 %s173, 1
        %s1751 = smul.addr %s1750, 256
        %s1752 = scalar_lea.vmem [#allocation11], %s1751
        // Predicated region
        $region65: #{tpu_custom_call.1} parent=39 // pred_check
          %p1753 = pneg %p183
        $region66: #{tpu_custom_call.1} parent=39 // pred_check_branch
          %1755 = sbr.rel (%p1753) target = $region68
        $region67: #{tpu_custom_call.1} parent=39 // pred_region
          %s1756 = smul.u32 32, %s32
          %1758 = vsyncadd %s1749, 0
          %s1759 = smul.addr %s1756, 8
          %s1760 = scalar_lea.hbm %s5, %s1759
          %s1761 = sshll.u32 %s1752, 4
          %s1762 = int_to_ptr.vmem [resolvable:$true] %s1761
          %s1763 = sshll.u32 %s1760, 4
          %s1764 = int_to_ptr.hbm [resolvable:$true] %s1763
          %1769 = dma.vmem_to_hbm [thread:$0]  %s1762, 4096, %s1764, %s1749, 128, 128, 8
        $region68: #{tpu_custom_call.1} parent=39 // pred_fallthru
          _
      $region40: #{tpu_custom_call.1} parent=5 // pred_fallthru
        _
      %p1770 = scmp.le.s32.totalorder 2, %s23
      // Predicated region
      $region69: #{tpu_custom_call.1} parent=5 // pred_check
        %p1771 = pneg %p1770
      $region70: #{tpu_custom_call.1} parent=5 // pred_check_branch
        %1773 = sbr.rel (%p1771) target = $region72
      $region71: #{tpu_custom_call.1} parent=5 // pred_region
        %s1774 = ssub.s32 %s23, 2
        // Predicated region
        $region73: #{tpu_custom_call.1} parent=71 // pred_check
          %p1775 = pneg %p189
        $region74: #{tpu_custom_call.1} parent=71 // pred_check_branch
          %1777 = sbr.rel (%p1775) target = $region76
        $region75: #{tpu_custom_call.1} parent=71 // pred_region
          %s1778 = sand.u32 %s174, 1
          %s1779 = scalar_lea.sflag [#allocation5], %s1778
          %s1780 = sand.u32 %s174, 1
          %s1781 = smul.addr %s1780, 256
          %s1782 = scalar_lea.vmem [#allocation11], %s1781
          %1784 = dma.done %s1779, 4096
        $region76: #{tpu_custom_call.1} parent=71 // pred_fallthru
          _
      $region72: #{tpu_custom_call.1} parent=5 // pred_fallthru
        _
    $region6: #{tpu_custom_call.1} parent=1 // loop_footer
      %s27 = sadd.s32 1, %s23
    $region7: #{tpu_custom_call.1} parent=1 // loop_footer_branch
      %22 = sbr.rel target = $region3
    $region8: #{tpu_custom_call.1} parent=1 // loop_exit
      _
    %1785 = vsyncpa [#allocation4], 1
    %s1786 = scalar_lea.sflag [#allocation4], 1
    %1787 = vsyncpa %s1786, 1
    %1788 = vsyncpa [#allocation7], 1
    %s1789 = scalar_lea.sflag [#allocation7], 1
    %1790 = vsyncpa %s1789, 1
    %1791 = vsyncpa [#allocation10], 1
    %s1792 = scalar_lea.sflag [#allocation10], 1
    %1793 = vsyncpa %s1792, 1
    %1794 = vsyncpa [#allocation5], 1
    %s1795 = scalar_lea.sflag [#allocation5], 1
    %1796 = vsyncpa %s1795, 1

</llo_original>
